<compile_context>
chip_gen: v6e
topology: v6e:2x2x1
jax: 0.10.0
libtpu: 0.0.40
codegen_flags: <defaults>
</compile_context>

<pallas_src>
import functools

import jax
import jax.numpy as jnp
from jax import lax
from jax.experimental import pallas as pl
from jax.experimental.pallas import tpu as pltpu


def gru_seq_kernel(x_ref, wih_ref, whh_r_ref, whh_z_ref, whh_n_ref,
                   bx_ref, bhn_ref, o_ref, *, seq_len, batch, return_seq):
    """Whole-sequence GRU in one kernel invocation (no grid).

    x_ref     : (T*B, D)  time-major inputs, row t*B + b == word_embs[b, t]
    wih_ref   : (D, 3H)   W_ih^T  (gate order r, z, n — PyTorch convention)
    whh_*_ref : (H, H)    per-gate W_hh^T slabs (r, z, n)
    bx_ref    : (1, 3H)   b_ih (all gates) + b_hh (r, z gates) pre-folded
    bhn_ref   : (1, H)    b_hh_n (must stay inside r * (gh_n + b_hh_n))
    o_ref     : (T, B, H) if return_seq else (B, H)
    """
    T, B = seq_len, batch
    H = whh_r_ref.shape[1]

    whh_r = whh_r_ref[...]
    whh_z = whh_z_ref[...]
    whh_n = whh_n_ref[...]
    bhn = bhn_ref[...]                                  # (1, H), broadcasts over B

    # ---- Prologue: hoisted input-side GEMM over all T*B rows + folded biases ----
    gx = (jnp.dot(x_ref[...], wih_ref[...], preferred_element_type=jnp.float32)
          + bx_ref[...])                                # (T*B, 3H)
    # One-time split into per-gate, lane-offset-0 slabs (loop-invariant values).
    gx_r = gx[:, 0 * H:1 * H]
    gx_z = gx[:, 1 * H:2 * H]
    gx_n = gx[:, 2 * H:3 * H]

    # ---- Serial recurrence over T (T=8: full unroll is fine for LLO scheduling).
    # TODO(synk): switch to lax.fori_loop(..., unroll=k) if T is scaled beyond ~32
    # to keep compile time / code size bounded.
    h = jnp.zeros((B, H), jnp.float32)
    for t in range(T):
        lo = t * B                                      # static, contiguous rows
        gh_r = jnp.dot(h, whh_r, preferred_element_type=jnp.float32)
        gh_z = jnp.dot(h, whh_z, preferred_element_type=jnp.float32)
        gh_n = jnp.dot(h, whh_n, preferred_element_type=jnp.float32)
        r = jax.nn.sigmoid(gx_r[lo:lo + B, :] + gh_r)
        z = jax.nn.sigmoid(gx_z[lo:lo + B, :] + gh_z)
        n = jnp.tanh(gx_n[lo:lo + B, :] + r * (gh_n + bhn))
        h = (1.0 - z) * n + z * h
        if return_seq:
            # Per-step store (leading-axis index): off the h chain, one vst,
            # keeps vreg live ranges bounded.
            o_ref[t] = h.astype(o_ref.dtype)

    if not return_seq:
        o_ref[...] = h.astype(o_ref.dtype)              # only the final state


@functools.partial(jax.jit, static_argnames=("return_seq",))
def gru_rnn_module_s(word_embs, w_ih, w_hh, b_ih, b_hh, *, return_seq=True):
    """Pallas equivalent of GRURNNModuleS.forward (eval mode / dropout=0).

    word_embs : (B, T, D)
    w_ih      : (3H, D)   PyTorch nn.GRU weight_ih_l0
    w_hh      : (3H, H)   PyTorch nn.GRU weight_hh_l0
    b_ih,b_hh : (3H,)
    """
    B, T, D = word_embs.shape
    H = w_hh.shape[1]

    # Time-major feed: each step's B rows are contiguous inside the kernel.
    x_tb = jnp.transpose(word_embs, (1, 0, 2)).reshape(T * B, D)

    # Loop-invariant weight prep (tiny). NOTE: in real use, cache these
    # transposed/split/folded params in the parameter pytree instead of
    # recomputing per forward call.
    wih_t = jnp.transpose(w_ih)                          # (D, 3H)
    whh_t = jnp.transpose(w_hh)                          # (H, 3H)
    whh_r = whh_t[:, 0 * H:1 * H]                        # (H, H)
    whh_z = whh_t[:, 1 * H:2 * H]
    whh_n = whh_t[:, 2 * H:3 * H]
    # Fold b_ih (all gates) + b_hh (r, z gates); b_hh_n stays separate.
    bias_x = (b_ih + jnp.concatenate(
        [b_hh[:2 * H], jnp.zeros((H,), b_hh.dtype)])).reshape(1, 3 * H)
    bias_hn = b_hh[2 * H:].reshape(1, H)

    out_shape = (jax.ShapeDtypeStruct((T, B, H), word_embs.dtype) if return_seq
                 else jax.ShapeDtypeStruct((B, H), word_embs.dtype))
    kernel = functools.partial(gru_seq_kernel, seq_len=T, batch=B,
                               return_seq=return_seq)

    out = pl.pallas_call(
        kernel,
        out_shape=out_shape,
        in_specs=[pl.BlockSpec(memory_space=pltpu.MemorySpace.VMEM)] * 7,
        out_specs=pl.BlockSpec(memory_space=pltpu.MemorySpace.VMEM),
    )(x_tb, wih_t, whh_r, whh_z, whh_n, bias_x, bias_hn)

    if return_seq:
        out = jnp.transpose(out, (1, 0, 2))              # (T,B,H) -> (B,T,H), 4 KB
    return out


def gru_reference(word_embs, w_ih, w_hh, b_ih, b_hh, return_seq=True):
    """Pure-JAX reference (PyTorch nn.GRU semantics) for correctness check."""
    B, T, D = word_embs.shape
    H = w_hh.shape[1]
    wih_t = w_ih.T
    whh_t = w_hh.T

    def step(h, x_t):
        gx = x_t @ wih_t + b_ih
        gh = h @ whh_t + b_hh
        r = jax.nn.sigmoid(gx[:, :H] + gh[:, :H])
        z = jax.nn.sigmoid(gx[:, H:2 * H] + gh[:, H:2 * H])
        n = jnp.tanh(gx[:, 2 * H:] + r * gh[:, 2 * H:])
        h_new = (1.0 - z) * n + z * h
        return h_new, h_new

    h0 = jnp.zeros((B, H), word_embs.dtype)
    _, ys = lax.scan(step, h0, jnp.transpose(word_embs, (1, 0, 2)))
    out = jnp.transpose(ys, (1, 0, 2))
    if not return_seq:
        out = out[:, -1, :]
    return out


if __name__ == "__main__":
    # Small shapes implied by the module: batch=4, seq=8, rnn_dim=32.
    B, T, D = 4, 8, 32
    H = D  # nn.GRU(rnn_dim, rnn_dim)

    key = jax.random.PRNGKey(0)
    k_x, k_wi, k_wh, k_bi, k_bh = jax.random.split(key, 5)

    # Deterministic param init, PyTorch-style U(-1/sqrt(H), 1/sqrt(H)).
    bound = 1.0 / (H ** 0.5)
    word_embs = jax.random.normal(k_x, (B, T, D), dtype=jnp.float32)
    w_ih = jax.random.uniform(k_wi, (3 * H, D), jnp.float32, -bound, bound)
    w_hh = jax.random.uniform(k_wh, (3 * H, H), jnp.float32, -bound, bound)
    b_ih = jax.random.uniform(k_bi, (3 * H,), jnp.float32, -bound, bound)
    b_hh = jax.random.uniform(k_bh, (3 * H,), jnp.float32, -bound, bound)

    # return_seq=True path.
    out_seq = jax.block_until_ready(
        gru_rnn_module_s(word_embs, w_ih, w_hh, b_ih, b_hh, return_seq=True))
    ref_seq = gru_reference(word_embs, w_ih, w_hh, b_ih, b_hh, return_seq=True)
    assert out_seq.shape == ref_seq.shape, (out_seq.shape, ref_seq.shape)
    assert jnp.allclose(out_seq, ref_seq, atol=2e-5, rtol=2e-5), float(
        jnp.max(jnp.abs(out_seq - ref_seq)))

    # return_seq=False path (only the final hidden state is written by the kernel).
    out_last = jax.block_until_ready(
        gru_rnn_module_s(word_embs, w_ih, w_hh, b_ih, b_hh, return_seq=False))
    ref_last = gru_reference(word_embs, w_ih, w_hh, b_ih, b_hh, return_seq=False)
    assert out_last.shape == ref_last.shape, (out_last.shape, ref_last.shape)
    assert jnp.allclose(out_last, ref_last, atol=2e-5, rtol=2e-5), float(
        jnp.max(jnp.abs(out_last - ref_last)))

    print("KERNEL_OK")
</pallas_src>

<mosaic_0001>
module attributes {stable_mosaic.version = 11 : i64} {
  func.func @gru_seq_kernel(%arg0: memref<32x32xf32, #tpu.memory_space<vmem>>, %arg1: memref<32x96xf32, #tpu.memory_space<vmem>>, %arg2: memref<32x32xf32, #tpu.memory_space<vmem>>, %arg3: memref<32x32xf32, #tpu.memory_space<vmem>>, %arg4: memref<32x32xf32, #tpu.memory_space<vmem>>, %arg5: memref<1x96xf32, #tpu.memory_space<vmem>>, %arg6: memref<1x32xf32, #tpu.memory_space<vmem>>, %arg7: memref<8x4x32xf32, #tpu.memory_space<vmem>>) attributes {dimension_semantics = [], scalar_prefetch = 0 : i64, scratch_operands = 0 : i64, tpu.core_type = #tpu.core_type<tc>} {
    %c0 = arith.constant 0 : index
    %c0_0 = arith.constant 0 : index
    %0 = vector.load %arg2[%c0, %c0_0] : memref<32x32xf32, #tpu.memory_space<vmem>>, vector<32x32xf32>
    %c0_1 = arith.constant 0 : index
    %c0_2 = arith.constant 0 : index
    %1 = vector.load %arg3[%c0_1, %c0_2] : memref<32x32xf32, #tpu.memory_space<vmem>>, vector<32x32xf32>
    %c0_3 = arith.constant 0 : index
    %c0_4 = arith.constant 0 : index
    %2 = vector.load %arg4[%c0_3, %c0_4] : memref<32x32xf32, #tpu.memory_space<vmem>>, vector<32x32xf32>
    %c0_5 = arith.constant 0 : index
    %c0_6 = arith.constant 0 : index
    %3 = vector.load %arg6[%c0_5, %c0_6] : memref<1x32xf32, #tpu.memory_space<vmem>>, vector<1x32xf32>
    %c0_7 = arith.constant 0 : index
    %c0_8 = arith.constant 0 : index
    %4 = vector.load %arg0[%c0_7, %c0_8] : memref<32x32xf32, #tpu.memory_space<vmem>>, vector<32x32xf32>
    %c0_9 = arith.constant 0 : index
    %c0_10 = arith.constant 0 : index
    %5 = vector.load %arg1[%c0_9, %c0_10] : memref<32x96xf32, #tpu.memory_space<vmem>>, vector<32x96xf32>
    %cst = arith.constant dense<0.000000e+00> : vector<32x96xf32>
    %6 = tpu.matmul %4, %5, %cst {dimension_numbers = #tpu.dot_dimension_numbers<[1], [0], [0], [1], [0, 0, 1, 1], [], []>} : vector<32x32xf32>, vector<32x96xf32>, vector<32x96xf32> -> vector<32x96xf32>
    %c0_11 = arith.constant 0 : index
    %c0_12 = arith.constant 0 : index
    %7 = vector.load %arg5[%c0_11, %c0_12] : memref<1x96xf32, #tpu.memory_space<vmem>>, vector<1x96xf32>
    %8 = vector.broadcast %7 : vector<1x96xf32> to vector<32x96xf32>
    %9 = arith.addf %6, %8 : vector<32x96xf32>
    %10 = vector.extract_strided_slice %9 {offsets = [0, 0], sizes = [32, 32], strides = [1, 1]} : vector<32x96xf32> to vector<32x32xf32>
    %11 = vector.extract_strided_slice %9 {offsets = [0, 32], sizes = [32, 32], strides = [1, 1]} : vector<32x96xf32> to vector<32x32xf32>
    %12 = vector.extract_strided_slice %9 {offsets = [0, 64], sizes = [32, 32], strides = [1, 1]} : vector<32x96xf32> to vector<32x32xf32>
    %cst_13 = arith.constant 0.000000e+00 : f32
    %13 = vector.broadcast %cst_13 : f32 to vector<4x32xf32>
    %cst_14 = arith.constant dense<0.000000e+00> : vector<4x32xf32>
    %14 = tpu.matmul %13, %0, %cst_14 {dimension_numbers = #tpu.dot_dimension_numbers<[1], [0], [0], [1], [0, 0, 1, 1], [], []>} : vector<4x32xf32>, vector<32x32xf32>, vector<4x32xf32> -> vector<4x32xf32>
    %cst_15 = arith.constant dense<0.000000e+00> : vector<4x32xf32>
    %15 = tpu.matmul %13, %1, %cst_15 {dimension_numbers = #tpu.dot_dimension_numbers<[1], [0], [0], [1], [0, 0, 1, 1], [], []>} : vector<4x32xf32>, vector<32x32xf32>, vector<4x32xf32> -> vector<4x32xf32>
    %cst_16 = arith.constant dense<0.000000e+00> : vector<4x32xf32>
    %16 = tpu.matmul %13, %2, %cst_16 {dimension_numbers = #tpu.dot_dimension_numbers<[1], [0], [0], [1], [0, 0, 1, 1], [], []>} : vector<4x32xf32>, vector<32x32xf32>, vector<4x32xf32> -> vector<4x32xf32>
    %17 = vector.extract_strided_slice %10 {offsets = [0, 0], sizes = [4, 32], strides = [1, 1]} : vector<32x32xf32> to vector<4x32xf32>
    %18 = arith.addf %17, %14 : vector<4x32xf32>
    %19 = arith.negf %18 : vector<4x32xf32>
    %20 = math.exp %19 : vector<4x32xf32>
    %cst_17 = arith.constant 1.000000e+00 : f32
    %21 = vector.broadcast %cst_17 : f32 to vector<4x32xf32>
    %22 = arith.addf %21, %20 : vector<4x32xf32>
    %23 = arith.divf %21, %22 : vector<4x32xf32>
    %24 = vector.extract_strided_slice %11 {offsets = [0, 0], sizes = [4, 32], strides = [1, 1]} : vector<32x32xf32> to vector<4x32xf32>
    %25 = arith.addf %24, %15 : vector<4x32xf32>
    %26 = arith.negf %25 : vector<4x32xf32>
    %27 = math.exp %26 : vector<4x32xf32>
    %cst_18 = arith.constant 1.000000e+00 : f32
    %28 = vector.broadcast %cst_18 : f32 to vector<4x32xf32>
    %29 = arith.addf %28, %27 : vector<4x32xf32>
    %30 = arith.divf %28, %29 : vector<4x32xf32>
    %31 = vector.extract_strided_slice %12 {offsets = [0, 0], sizes = [4, 32], strides = [1, 1]} : vector<32x32xf32> to vector<4x32xf32>
    %32 = vector.broadcast %3 : vector<1x32xf32> to vector<4x32xf32>
    %33 = arith.addf %16, %32 : vector<4x32xf32>
    %34 = arith.mulf %23, %33 : vector<4x32xf32>
    %35 = arith.addf %31, %34 : vector<4x32xf32>
    %36 = math.tanh %35 : vector<4x32xf32>
    %cst_19 = arith.constant 1.000000e+00 : f32
    %37 = vector.broadcast %cst_19 : f32 to vector<4x32xf32>
    %38 = arith.subf %37, %30 : vector<4x32xf32>
    %39 = arith.mulf %38, %36 : vector<4x32xf32>
    %40 = arith.mulf %30, %13 : vector<4x32xf32>
    %41 = arith.addf %39, %40 : vector<4x32xf32>
    %c0_20 = arith.constant 0 : index
    %c0_21 = arith.constant 0 : index
    %c0_22 = arith.constant 0 : index
    %42 = vector.load %arg7[%c0_20, %c0_21, %c0_22] : memref<8x4x32xf32, #tpu.memory_space<vmem>>, vector<1x4x32xf32>
    %43 = vector.shape_cast %42 : vector<1x4x32xf32> to vector<4x32xf32>
    %44 = vector.shape_cast %41 : vector<4x32xf32> to vector<1x4x32xf32>
    tpu.vector_store %arg7[%c0_20, %c0_21, %c0_22], %44 {strides = array<i32>} : memref<8x4x32xf32, #tpu.memory_space<vmem>>, vector<1x4x32xf32>,
    %cst_23 = arith.constant dense<0.000000e+00> : vector<4x32xf32>
    %45 = tpu.matmul %41, %0, %cst_23 {dimension_numbers = #tpu.dot_dimension_numbers<[1], [0], [0], [1], [0, 0, 1, 1], [], []>} : vector<4x32xf32>, vector<32x32xf32>, vector<4x32xf32> -> vector<4x32xf32>
    %cst_24 = arith.constant dense<0.000000e+00> : vector<4x32xf32>
    %46 = tpu.matmul %41, %1, %cst_24 {dimension_numbers = #tpu.dot_dimension_numbers<[1], [0], [0], [1], [0, 0, 1, 1], [], []>} : vector<4x32xf32>, vector<32x32xf32>, vector<4x32xf32> -> vector<4x32xf32>
    %cst_25 = arith.constant dense<0.000000e+00> : vector<4x32xf32>
    %47 = tpu.matmul %41, %2, %cst_25 {dimension_numbers = #tpu.dot_dimension_numbers<[1], [0], [0], [1], [0, 0, 1, 1], [], []>} : vector<4x32xf32>, vector<32x32xf32>, vector<4x32xf32> -> vector<4x32xf32>
    %48 = vector.extract_strided_slice %10 {offsets = [4, 0], sizes = [4, 32], strides = [1, 1]} : vector<32x32xf32> to vector<4x32xf32>
    %49 = arith.addf %48, %45 : vector<4x32xf32>
    %50 = arith.negf %49 : vector<4x32xf32>
    %51 = math.exp %50 : vector<4x32xf32>
    %cst_26 = arith.constant 1.000000e+00 : f32
    %52 = vector.broadcast %cst_26 : f32 to vector<4x32xf32>
    %53 = arith.addf %52, %51 : vector<4x32xf32>
    %54 = arith.divf %52, %53 : vector<4x32xf32>
    %55 = vector.extract_strided_slice %11 {offsets = [4, 0], sizes = [4, 32], strides = [1, 1]} : vector<32x32xf32> to vector<4x32xf32>
    %56 = arith.addf %55, %46 : vector<4x32xf32>
    %57 = arith.negf %56 : vector<4x32xf32>
    %58 = math.exp %57 : vector<4x32xf32>
    %cst_27 = arith.constant 1.000000e+00 : f32
    %59 = vector.broadcast %cst_27 : f32 to vector<4x32xf32>
    %60 = arith.addf %59, %58 : vector<4x32xf32>
    %61 = arith.divf %59, %60 : vector<4x32xf32>
    %62 = vector.extract_strided_slice %12 {offsets = [4, 0], sizes = [4, 32], strides = [1, 1]} : vector<32x32xf32> to vector<4x32xf32>
    %63 = vector.broadcast %3 : vector<1x32xf32> to vector<4x32xf32>
    %64 = arith.addf %47, %63 : vector<4x32xf32>
    %65 = arith.mulf %54, %64 : vector<4x32xf32>
    %66 = arith.addf %62, %65 : vector<4x32xf32>
    %67 = math.tanh %66 : vector<4x32xf32>
    %cst_28 = arith.constant 1.000000e+00 : f32
    %68 = vector.broadcast %cst_28 : f32 to vector<4x32xf32>
    %69 = arith.subf %68, %61 : vector<4x32xf32>
    %70 = arith.mulf %69, %67 : vector<4x32xf32>
    %71 = arith.mulf %61, %41 : vector<4x32xf32>
    %72 = arith.addf %70, %71 : vector<4x32xf32>
    %c1 = arith.constant 1 : index
    %c0_29 = arith.constant 0 : index
    %c0_30 = arith.constant 0 : index
    %73 = vector.load %arg7[%c1, %c0_29, %c0_30] : memref<8x4x32xf32, #tpu.memory_space<vmem>>, vector<1x4x32xf32>
    %74 = vector.shape_cast %73 : vector<1x4x32xf32> to vector<4x32xf32>
    %75 = vector.shape_cast %72 : vector<4x32xf32> to vector<1x4x32xf32>
    tpu.vector_store %arg7[%c1, %c0_29, %c0_30], %75 {strides = array<i32>} : memref<8x4x32xf32, #tpu.memory_space<vmem>>, vector<1x4x32xf32>,
    %cst_31 = arith.constant dense<0.000000e+00> : vector<4x32xf32>
    %76 = tpu.matmul %72, %0, %cst_31 {dimension_numbers = #tpu.dot_dimension_numbers<[1], [0], [0], [1], [0, 0, 1, 1], [], []>} : vector<4x32xf32>, vector<32x32xf32>, vector<4x32xf32> -> vector<4x32xf32>
    %cst_32 = arith.constant dense<0.000000e+00> : vector<4x32xf32>
    %77 = tpu.matmul %72, %1, %cst_32 {dimension_numbers = #tpu.dot_dimension_numbers<[1], [0], [0], [1], [0, 0, 1, 1], [], []>} : vector<4x32xf32>, vector<32x32xf32>, vector<4x32xf32> -> vector<4x32xf32>
    %cst_33 = arith.constant dense<0.000000e+00> : vector<4x32xf32>
    %78 = tpu.matmul %72, %2, %cst_33 {dimension_numbers = #tpu.dot_dimension_numbers<[1], [0], [0], [1], [0, 0, 1, 1], [], []>} : vector<4x32xf32>, vector<32x32xf32>, vector<4x32xf32> -> vector<4x32xf32>
    %79 = vector.extract_strided_slice %10 {offsets = [8, 0], sizes = [4, 32], strides = [1, 1]} : vector<32x32xf32> to vector<4x32xf32>
    %80 = arith.addf %79, %76 : vector<4x32xf32>
    %81 = arith.negf %80 : vector<4x32xf32>
    %82 = math.exp %81 : vector<4x32xf32>
    %cst_34 = arith.constant 1.000000e+00 : f32
    %83 = vector.broadcast %cst_34 : f32 to vector<4x32xf32>
    %84 = arith.addf %83, %82 : vector<4x32xf32>
    %85 = arith.divf %83, %84 : vector<4x32xf32>
    %86 = vector.extract_strided_slice %11 {offsets = [8, 0], sizes = [4, 32], strides = [1, 1]} : vector<32x32xf32> to vector<4x32xf32>
    %87 = arith.addf %86, %77 : vector<4x32xf32>
    %88 = arith.negf %87 : vector<4x32xf32>
    %89 = math.exp %88 : vector<4x32xf32>
    %cst_35 = arith.constant 1.000000e+00 : f32
    %90 = vector.broadcast %cst_35 : f32 to vector<4x32xf32>
    %91 = arith.addf %90, %89 : vector<4x32xf32>
    %92 = arith.divf %90, %91 : vector<4x32xf32>
    %93 = vector.extract_strided_slice %12 {offsets = [8, 0], sizes = [4, 32], strides = [1, 1]} : vector<32x32xf32> to vector<4x32xf32>
    %94 = vector.broadcast %3 : vector<1x32xf32> to vector<4x32xf32>
    %95 = arith.addf %78, %94 : vector<4x32xf32>
    %96 = arith.mulf %85, %95 : vector<4x32xf32>
    %97 = arith.addf %93, %96 : vector<4x32xf32>
    %98 = math.tanh %97 : vector<4x32xf32>
    %cst_36 = arith.constant 1.000000e+00 : f32
    %99 = vector.broadcast %cst_36 : f32 to vector<4x32xf32>
    %100 = arith.subf %99, %92 : vector<4x32xf32>
    %101 = arith.mulf %100, %98 : vector<4x32xf32>
    %102 = arith.mulf %92, %72 : vector<4x32xf32>
    %103 = arith.addf %101, %102 : vector<4x32xf32>
    %c2 = arith.constant 2 : index
    %c0_37 = arith.constant 0 : index
    %c0_38 = arith.constant 0 : index
    %104 = vector.load %arg7[%c2, %c0_37, %c0_38] : memref<8x4x32xf32, #tpu.memory_space<vmem>>, vector<1x4x32xf32>
    %105 = vector.shape_cast %104 : vector<1x4x32xf32> to vector<4x32xf32>
    %106 = vector.shape_cast %103 : vector<4x32xf32> to vector<1x4x32xf32>
    tpu.vector_store %arg7[%c2, %c0_37, %c0_38], %106 {strides = array<i32>} : memref<8x4x32xf32, #tpu.memory_space<vmem>>, vector<1x4x32xf32>,
    %cst_39 = arith.constant dense<0.000000e+00> : vector<4x32xf32>
    %107 = tpu.matmul %103, %0, %cst_39 {dimension_numbers = #tpu.dot_dimension_numbers<[1], [0], [0], [1], [0, 0, 1, 1], [], []>} : vector<4x32xf32>, vector<32x32xf32>, vector<4x32xf32> -> vector<4x32xf32>
    %cst_40 = arith.constant dense<0.000000e+00> : vector<4x32xf32>
    %108 = tpu.matmul %103, %1, %cst_40 {dimension_numbers = #tpu.dot_dimension_numbers<[1], [0], [0], [1], [0, 0, 1, 1], [], []>} : vector<4x32xf32>, vector<32x32xf32>, vector<4x32xf32> -> vector<4x32xf32>
    %cst_41 = arith.constant dense<0.000000e+00> : vector<4x32xf32>
    %109 = tpu.matmul %103, %2, %cst_41 {dimension_numbers = #tpu.dot_dimension_numbers<[1], [0], [0], [1], [0, 0, 1, 1], [], []>} : vector<4x32xf32>, vector<32x32xf32>, vector<4x32xf32> -> vector<4x32xf32>
    %110 = vector.extract_strided_slice %10 {offsets = [12, 0], sizes = [4, 32], strides = [1, 1]} : vector<32x32xf32> to vector<4x32xf32>
    %111 = arith.addf %110, %107 : vector<4x32xf32>
    %112 = arith.negf %111 : vector<4x32xf32>
    %113 = math.exp %112 : vector<4x32xf32>
    %cst_42 = arith.constant 1.000000e+00 : f32
    %114 = vector.broadcast %cst_42 : f32 to vector<4x32xf32>
    %115 = arith.addf %114, %113 : vector<4x32xf32>
    %116 = arith.divf %114, %115 : vector<4x32xf32>
    %117 = vector.extract_strided_slice %11 {offsets = [12, 0], sizes = [4, 32], strides = [1, 1]} : vector<32x32xf32> to vector<4x32xf32>
    %118 = arith.addf %117, %108 : vector<4x32xf32>
    %119 = arith.negf %118 : vector<4x32xf32>
    %120 = math.exp %119 : vector<4x32xf32>
    %cst_43 = arith.constant 1.000000e+00 : f32
    %121 = vector.broadcast %cst_43 : f32 to vector<4x32xf32>
    %122 = arith.addf %121, %120 : vector<4x32xf32>
    %123 = arith.divf %121, %122 : vector<4x32xf32>
    %124 = vector.extract_strided_slice %12 {offsets = [12, 0], sizes = [4, 32], strides = [1, 1]} : vector<32x32xf32> to vector<4x32xf32>
    %125 = vector.broadcast %3 : vector<1x32xf32> to vector<4x32xf32>
    %126 = arith.addf %109, %125 : vector<4x32xf32>
    %127 = arith.mulf %116, %126 : vector<4x32xf32>
    %128 = arith.addf %124, %127 : vector<4x32xf32>
    %129 = math.tanh %128 : vector<4x32xf32>
    %cst_44 = arith.constant 1.000000e+00 : f32
    %130 = vector.broadcast %cst_44 : f32 to vector<4x32xf32>
    %131 = arith.subf %130, %123 : vector<4x32xf32>
    %132 = arith.mulf %131, %129 : vector<4x32xf32>
    %133 = arith.mulf %123, %103 : vector<4x32xf32>
    %134 = arith.addf %132, %133 : vector<4x32xf32>
    %c3 = arith.constant 3 : index
    %c0_45 = arith.constant 0 : index
    %c0_46 = arith.constant 0 : index
    %135 = vector.load %arg7[%c3, %c0_45, %c0_46] : memref<8x4x32xf32, #tpu.memory_space<vmem>>, vector<1x4x32xf32>
    %136 = vector.shape_cast %135 : vector<1x4x32xf32> to vector<4x32xf32>
    %137 = vector.shape_cast %134 : vector<4x32xf32> to vector<1x4x32xf32>
    tpu.vector_store %arg7[%c3, %c0_45, %c0_46], %137 {strides = array<i32>} : memref<8x4x32xf32, #tpu.memory_space<vmem>>, vector<1x4x32xf32>,
    %cst_47 = arith.constant dense<0.000000e+00> : vector<4x32xf32>
    %138 = tpu.matmul %134, %0, %cst_47 {dimension_numbers = #tpu.dot_dimension_numbers<[1], [0], [0], [1], [0, 0, 1, 1], [], []>} : vector<4x32xf32>, vector<32x32xf32>, vector<4x32xf32> -> vector<4x32xf32>
    %cst_48 = arith.constant dense<0.000000e+00> : vector<4x32xf32>
    %139 = tpu.matmul %134, %1, %cst_48 {dimension_numbers = #tpu.dot_dimension_numbers<[1], [0], [0], [1], [0, 0, 1, 1], [], []>} : vector<4x32xf32>, vector<32x32xf32>, vector<4x32xf32> -> vector<4x32xf32>
    %cst_49 = arith.constant dense<0.000000e+00> : vector<4x32xf32>
    %140 = tpu.matmul %134, %2, %cst_49 {dimension_numbers = #tpu.dot_dimension_numbers<[1], [0], [0], [1], [0, 0, 1, 1], [], []>} : vector<4x32xf32>, vector<32x32xf32>, vector<4x32xf32> -> vector<4x32xf32>
    %141 = vector.extract_strided_slice %10 {offsets = [16, 0], sizes = [4, 32], strides = [1, 1]} : vector<32x32xf32> to vector<4x32xf32>
    %142 = arith.addf %141, %138 : vector<4x32xf32>
    %143 = arith.negf %142 : vector<4x32xf32>
    %144 = math.exp %143 : vector<4x32xf32>
    %cst_50 = arith.constant 1.000000e+00 : f32
    %145 = vector.broadcast %cst_50 : f32 to vector<4x32xf32>
    %146 = arith.addf %145, %144 : vector<4x32xf32>
    %147 = arith.divf %145, %146 : vector<4x32xf32>
    %148 = vector.extract_strided_slice %11 {offsets = [16, 0], sizes = [4, 32], strides = [1, 1]} : vector<32x32xf32> to vector<4x32xf32>
    %149 = arith.addf %148, %139 : vector<4x32xf32>
    %150 = arith.negf %149 : vector<4x32xf32>
    %151 = math.exp %150 : vector<4x32xf32>
    %cst_51 = arith.constant 1.000000e+00 : f32
    %152 = vector.broadcast %cst_51 : f32 to vector<4x32xf32>
    %153 = arith.addf %152, %151 : vector<4x32xf32>
    %154 = arith.divf %152, %153 : vector<4x32xf32>
    %155 = vector.extract_strided_slice %12 {offsets = [16, 0], sizes = [4, 32], strides = [1, 1]} : vector<32x32xf32> to vector<4x32xf32>
    %156 = vector.broadcast %3 : vector<1x32xf32> to vector<4x32xf32>
    %157 = arith.addf %140, %156 : vector<4x32xf32>
    %158 = arith.mulf %147, %157 : vector<4x32xf32>
    %159 = arith.addf %155, %158 : vector<4x32xf32>
    %160 = math.tanh %159 : vector<4x32xf32>
    %cst_52 = arith.constant 1.000000e+00 : f32
    %161 = vector.broadcast %cst_52 : f32 to vector<4x32xf32>
    %162 = arith.subf %161, %154 : vector<4x32xf32>
    %163 = arith.mulf %162, %160 : vector<4x32xf32>
    %164 = arith.mulf %154, %134 : vector<4x32xf32>
    %165 = arith.addf %163, %164 : vector<4x32xf32>
    %c4 = arith.constant 4 : index
    %c0_53 = arith.constant 0 : index
    %c0_54 = arith.constant 0 : index
    %166 = vector.load %arg7[%c4, %c0_53, %c0_54] : memref<8x4x32xf32, #tpu.memory_space<vmem>>, vector<1x4x32xf32>
    %167 = vector.shape_cast %166 : vector<1x4x32xf32> to vector<4x32xf32>
    %168 = vector.shape_cast %165 : vector<4x32xf32> to vector<1x4x32xf32>
    tpu.vector_store %arg7[%c4, %c0_53, %c0_54], %168 {strides = array<i32>} : memref<8x4x32xf32, #tpu.memory_space<vmem>>, vector<1x4x32xf32>,
    %cst_55 = arith.constant dense<0.000000e+00> : vector<4x32xf32>
    %169 = tpu.matmul %165, %0, %cst_55 {dimension_numbers = #tpu.dot_dimension_numbers<[1], [0], [0], [1], [0, 0, 1, 1], [], []>} : vector<4x32xf32>, vector<32x32xf32>, vector<4x32xf32> -> vector<4x32xf32>
    %cst_56 = arith.constant dense<0.000000e+00> : vector<4x32xf32>
    %170 = tpu.matmul %165, %1, %cst_56 {dimension_numbers = #tpu.dot_dimension_numbers<[1], [0], [0], [1], [0, 0, 1, 1], [], []>} : vector<4x32xf32>, vector<32x32xf32>, vector<4x32xf32> -> vector<4x32xf32>
    %cst_57 = arith.constant dense<0.000000e+00> : vector<4x32xf32>
    %171 = tpu.matmul %165, %2, %cst_57 {dimension_numbers = #tpu.dot_dimension_numbers<[1], [0], [0], [1], [0, 0, 1, 1], [], []>} : vector<4x32xf32>, vector<32x32xf32>, vector<4x32xf32> -> vector<4x32xf32>
    %172 = vector.extract_strided_slice %10 {offsets = [20, 0], sizes = [4, 32], strides = [1, 1]} : vector<32x32xf32> to vector<4x32xf32>
    %173 = arith.addf %172, %169 : vector<4x32xf32>
    %174 = arith.negf %173 : vector<4x32xf32>
    %175 = math.exp %174 : vector<4x32xf32>
    %cst_58 = arith.constant 1.000000e+00 : f32
    %176 = vector.broadcast %cst_58 : f32 to vector<4x32xf32>
    %177 = arith.addf %176, %175 : vector<4x32xf32>
    %178 = arith.divf %176, %177 : vector<4x32xf32>
    %179 = vector.extract_strided_slice %11 {offsets = [20, 0], sizes = [4, 32], strides = [1, 1]} : vector<32x32xf32> to vector<4x32xf32>
    %180 = arith.addf %179, %170 : vector<4x32xf32>
    %181 = arith.negf %180 : vector<4x32xf32>
    %182 = math.exp %181 : vector<4x32xf32>
    %cst_59 = arith.constant 1.000000e+00 : f32
    %183 = vector.broadcast %cst_59 : f32 to vector<4x32xf32>
    %184 = arith.addf %183, %182 : vector<4x32xf32>
    %185 = arith.divf %183, %184 : vector<4x32xf32>
    %186 = vector.extract_strided_slice %12 {offsets = [20, 0], sizes = [4, 32], strides = [1, 1]} : vector<32x32xf32> to vector<4x32xf32>
    %187 = vector.broadcast %3 : vector<1x32xf32> to vector<4x32xf32>
    %188 = arith.addf %171, %187 : vector<4x32xf32>
    %189 = arith.mulf %178, %188 : vector<4x32xf32>
    %190 = arith.addf %186, %189 : vector<4x32xf32>
    %191 = math.tanh %190 : vector<4x32xf32>
    %cst_60 = arith.constant 1.000000e+00 : f32
    %192 = vector.broadcast %cst_60 : f32 to vector<4x32xf32>
    %193 = arith.subf %192, %185 : vector<4x32xf32>
    %194 = arith.mulf %193, %191 : vector<4x32xf32>
    %195 = arith.mulf %185, %165 : vector<4x32xf32>
    %196 = arith.addf %194, %195 : vector<4x32xf32>
    %c5 = arith.constant 5 : index
    %c0_61 = arith.constant 0 : index
    %c0_62 = arith.constant 0 : index
    %197 = vector.load %arg7[%c5, %c0_61, %c0_62] : memref<8x4x32xf32, #tpu.memory_space<vmem>>, vector<1x4x32xf32>
    %198 = vector.shape_cast %197 : vector<1x4x32xf32> to vector<4x32xf32>
    %199 = vector.shape_cast %196 : vector<4x32xf32> to vector<1x4x32xf32>
    tpu.vector_store %arg7[%c5, %c0_61, %c0_62], %199 {strides = array<i32>} : memref<8x4x32xf32, #tpu.memory_space<vmem>>, vector<1x4x32xf32>,
    %cst_63 = arith.constant dense<0.000000e+00> : vector<4x32xf32>
    %200 = tpu.matmul %196, %0, %cst_63 {dimension_numbers = #tpu.dot_dimension_numbers<[1], [0], [0], [1], [0, 0, 1, 1], [], []>} : vector<4x32xf32>, vector<32x32xf32>, vector<4x32xf32> -> vector<4x32xf32>
    %cst_64 = arith.constant dense<0.000000e+00> : vector<4x32xf32>
    %201 = tpu.matmul %196, %1, %cst_64 {dimension_numbers = #tpu.dot_dimension_numbers<[1], [0], [0], [1], [0, 0, 1, 1], [], []>} : vector<4x32xf32>, vector<32x32xf32>, vector<4x32xf32> -> vector<4x32xf32>
    %cst_65 = arith.constant dense<0.000000e+00> : vector<4x32xf32>
    %202 = tpu.matmul %196, %2, %cst_65 {dimension_numbers = #tpu.dot_dimension_numbers<[1], [0], [0], [1], [0, 0, 1, 1], [], []>} : vector<4x32xf32>, vector<32x32xf32>, vector<4x32xf32> -> vector<4x32xf32>
    %203 = vector.extract_strided_slice %10 {offsets = [24, 0], sizes = [4, 32], strides = [1, 1]} : vector<32x32xf32> to vector<4x32xf32>
    %204 = arith.addf %203, %200 : vector<4x32xf32>
    %205 = arith.negf %204 : vector<4x32xf32>
    %206 = math.exp %205 : vector<4x32xf32>
    %cst_66 = arith.constant 1.000000e+00 : f32
    %207 = vector.broadcast %cst_66 : f32 to vector<4x32xf32>
    %208 = arith.addf %207, %206 : vector<4x32xf32>
    %209 = arith.divf %207, %208 : vector<4x32xf32>
    %210 = vector.extract_strided_slice %11 {offsets = [24, 0], sizes = [4, 32], strides = [1, 1]} : vector<32x32xf32> to vector<4x32xf32>
    %211 = arith.addf %210, %201 : vector<4x32xf32>
    %212 = arith.negf %211 : vector<4x32xf32>
    %213 = math.exp %212 : vector<4x32xf32>
    %cst_67 = arith.constant 1.000000e+00 : f32
    %214 = vector.broadcast %cst_67 : f32 to vector<4x32xf32>
    %215 = arith.addf %214, %213 : vector<4x32xf32>
    %216 = arith.divf %214, %215 : vector<4x32xf32>
    %217 = vector.extract_strided_slice %12 {offsets = [24, 0], sizes = [4, 32], strides = [1, 1]} : vector<32x32xf32> to vector<4x32xf32>
    %218 = vector.broadcast %3 : vector<1x32xf32> to vector<4x32xf32>
    %219 = arith.addf %202, %218 : vector<4x32xf32>
    %220 = arith.mulf %209, %219 : vector<4x32xf32>
    %221 = arith.addf %217, %220 : vector<4x32xf32>
    %222 = math.tanh %221 : vector<4x32xf32>
    %cst_68 = arith.constant 1.000000e+00 : f32
    %223 = vector.broadcast %cst_68 : f32 to vector<4x32xf32>
    %224 = arith.subf %223, %216 : vector<4x32xf32>
    %225 = arith.mulf %224, %222 : vector<4x32xf32>
    %226 = arith.mulf %216, %196 : vector<4x32xf32>
    %227 = arith.addf %225, %226 : vector<4x32xf32>
    %c6 = arith.constant 6 : index
    %c0_69 = arith.constant 0 : index
    %c0_70 = arith.constant 0 : index
    %228 = vector.load %arg7[%c6, %c0_69, %c0_70] : memref<8x4x32xf32, #tpu.memory_space<vmem>>, vector<1x4x32xf32>
    %229 = vector.shape_cast %228 : vector<1x4x32xf32> to vector<4x32xf32>
    %230 = vector.shape_cast %227 : vector<4x32xf32> to vector<1x4x32xf32>
    tpu.vector_store %arg7[%c6, %c0_69, %c0_70], %230 {strides = array<i32>} : memref<8x4x32xf32, #tpu.memory_space<vmem>>, vector<1x4x32xf32>,
    %cst_71 = arith.constant dense<0.000000e+00> : vector<4x32xf32>
    %231 = tpu.matmul %227, %0, %cst_71 {dimension_numbers = #tpu.dot_dimension_numbers<[1], [0], [0], [1], [0, 0, 1, 1], [], []>} : vector<4x32xf32>, vector<32x32xf32>, vector<4x32xf32> -> vector<4x32xf32>
    %cst_72 = arith.constant dense<0.000000e+00> : vector<4x32xf32>
    %232 = tpu.matmul %227, %1, %cst_72 {dimension_numbers = #tpu.dot_dimension_numbers<[1], [0], [0], [1], [0, 0, 1, 1], [], []>} : vector<4x32xf32>, vector<32x32xf32>, vector<4x32xf32> -> vector<4x32xf32>
    %cst_73 = arith.constant dense<0.000000e+00> : vector<4x32xf32>
    %233 = tpu.matmul %227, %2, %cst_73 {dimension_numbers = #tpu.dot_dimension_numbers<[1], [0], [0], [1], [0, 0, 1, 1], [], []>} : vector<4x32xf32>, vector<32x32xf32>, vector<4x32xf32> -> vector<4x32xf32>
    %234 = vector.extract_strided_slice %10 {offsets = [28, 0], sizes = [4, 32], strides = [1, 1]} : vector<32x32xf32> to vector<4x32xf32>
    %235 = arith.addf %234, %231 : vector<4x32xf32>
    %236 = arith.negf %235 : vector<4x32xf32>
    %237 = math.exp %236 : vector<4x32xf32>
    %cst_74 = arith.constant 1.000000e+00 : f32
    %238 = vector.broadcast %cst_74 : f32 to vector<4x32xf32>
    %239 = arith.addf %238, %237 : vector<4x32xf32>
    %240 = arith.divf %238, %239 : vector<4x32xf32>
    %241 = vector.extract_strided_slice %11 {offsets = [28, 0], sizes = [4, 32], strides = [1, 1]} : vector<32x32xf32> to vector<4x32xf32>
    %242 = arith.addf %241, %232 : vector<4x32xf32>
    %243 = arith.negf %242 : vector<4x32xf32>
    %244 = math.exp %243 : vector<4x32xf32>
    %cst_75 = arith.constant 1.000000e+00 : f32
    %245 = vector.broadcast %cst_75 : f32 to vector<4x32xf32>
    %246 = arith.addf %245, %244 : vector<4x32xf32>
    %247 = arith.divf %245, %246 : vector<4x32xf32>
    %248 = vector.extract_strided_slice %12 {offsets = [28, 0], sizes = [4, 32], strides = [1, 1]} : vector<32x32xf32> to vector<4x32xf32>
    %249 = vector.broadcast %3 : vector<1x32xf32> to vector<4x32xf32>
    %250 = arith.addf %233, %249 : vector<4x32xf32>
    %251 = arith.mulf %240, %250 : vector<4x32xf32>
    %252 = arith.addf %248, %251 : vector<4x32xf32>
    %253 = math.tanh %252 : vector<4x32xf32>
    %cst_76 = arith.constant 1.000000e+00 : f32
    %254 = vector.broadcast %cst_76 : f32 to vector<4x32xf32>
    %255 = arith.subf %254, %247 : vector<4x32xf32>
    %256 = arith.mulf %255, %253 : vector<4x32xf32>
    %257 = arith.mulf %247, %227 : vector<4x32xf32>
    %258 = arith.addf %256, %257 : vector<4x32xf32>
    %c7 = arith.constant 7 : index
    %c0_77 = arith.constant 0 : index
    %c0_78 = arith.constant 0 : index
    %259 = vector.load %arg7[%c7, %c0_77, %c0_78] : memref<8x4x32xf32, #tpu.memory_space<vmem>>, vector<1x4x32xf32>
    %260 = vector.shape_cast %259 : vector<1x4x32xf32> to vector<4x32xf32>
    %261 = vector.shape_cast %258 : vector<4x32xf32> to vector<1x4x32xf32>
    tpu.vector_store %arg7[%c7, %c0_77, %c0_78], %261 {strides = array<i32>} : memref<8x4x32xf32, #tpu.memory_space<vmem>>, vector<1x4x32xf32>,
    return
  }
}

</mosaic_0001>

<llo_original>
// kernel: gru_rnn_module_s.1
$region0: #{gru_rnn_module_s.1}
  #allocation0 [shape = 'u32[]', space=smem, size = 0x4, offset = 0x4, fixed_abs, tag = 'smem constant byte address 0x4 - core index']
  #allocation1 [shape = 'u32[144,128]{1,0:T(1,128)}', space=vmem, size = 0x12000, scoped, tag = 'internal scratch']
  %s0 = inlined_call_operand.vmem [shape: f32[32,32], index: 0, kind: input, shape index: {}]
  %s1 = inlined_call_operand.vmem [shape: f32[32,96], index: 1, kind: input, shape index: {}]
  %s2 = inlined_call_operand.vmem [shape: f32[32,32], index: 2, kind: input, shape index: {}]
  %s3 = inlined_call_operand.vmem [shape: f32[32,32], index: 3, kind: input, shape index: {}]
  %s4 = inlined_call_operand.vmem [shape: f32[32,32], index: 4, kind: input, shape index: {}]
  %s5 = inlined_call_operand.vmem [shape: f32[1,96], index: 5, kind: input, shape index: {}]
  %s6 = inlined_call_operand.vmem [shape: f32[1,32], index: 6, kind: input, shape index: {}]
  %s7 = inlined_call_operand.vmem [shape: f32[8,4,32], index: 7, kind: output, shape index: {}]
  %s8 = sld [smem:[#allocation0]]
  $region38: #{gru_rnn_module_s.1} parent=0
    _
  %s10 = ssub.s32 1, %s8
  %s11 = scalar_select 0, %s10, %s8
  // Predicated region
  $region2: #{gru_rnn_module_s.1} parent=0 // pred_check
    _
  $region3: #{gru_rnn_module_s.1} parent=0 // pred_check_branch
    %13 = sbr.rel (0) target = $region5
  $region4: #{gru_rnn_module_s.1} parent=0 // pred_region
    _
  $region5: #{gru_rnn_module_s.1} parent=0 // pred_fallthru
    _
  // Predicated region
  $region6: #{gru_rnn_module_s.1} parent=0 // pred_check
    _
  $region7: #{gru_rnn_module_s.1} parent=0 // pred_check_branch
    %15 = sbr.rel (0) target = $region9
  $region8: #{gru_rnn_module_s.1} parent=0 // pred_region
    _
  $region9: #{gru_rnn_module_s.1} parent=0 // pred_fallthru
    _
  // Predicated region
  $region10: #{gru_rnn_module_s.1} parent=0 // pred_check
    _
  $region11: #{gru_rnn_module_s.1} parent=0 // pred_check_branch
    %17 = sbr.rel (0) target = $region13
  $region12: #{gru_rnn_module_s.1} parent=0 // pred_region
    _
  $region13: #{gru_rnn_module_s.1} parent=0 // pred_fallthru
    _
  // Predicated region
  $region14: #{gru_rnn_module_s.1} parent=0 // pred_check
    _
  $region15: #{gru_rnn_module_s.1} parent=0 // pred_check_branch
    %19 = sbr.rel (0) target = $region17
  $region16: #{gru_rnn_module_s.1} parent=0 // pred_region
    _
  $region17: #{gru_rnn_module_s.1} parent=0 // pred_fallthru
    _
  // Predicated region
  $region18: #{gru_rnn_module_s.1} parent=0 // pred_check
    _
  $region19: #{gru_rnn_module_s.1} parent=0 // pred_check_branch
    %21 = sbr.rel (0) target = $region21
  $region20: #{gru_rnn_module_s.1} parent=0 // pred_region
    _
  $region21: #{gru_rnn_module_s.1} parent=0 // pred_fallthru
    _
  // Predicated region
  $region22: #{gru_rnn_module_s.1} parent=0 // pred_check
    _
  $region23: #{gru_rnn_module_s.1} parent=0 // pred_check_branch
    %23 = sbr.rel (0) target = $region25
  $region24: #{gru_rnn_module_s.1} parent=0 // pred_region
    _
  $region25: #{gru_rnn_module_s.1} parent=0 // pred_fallthru
    _
  // Predicated region
  $region26: #{gru_rnn_module_s.1} parent=0 // pred_check
    _
  $region27: #{gru_rnn_module_s.1} parent=0 // pred_check_branch
    %25 = sbr.rel (0) target = $region29
  $region28: #{gru_rnn_module_s.1} parent=0 // pred_region
    _
  $region29: #{gru_rnn_module_s.1} parent=0 // pred_fallthru
    _
  %v26 = vld [vmem:[%s2] sm:$0xff]
  %v27 = vld [vmem:[%s2 + $0x8] sm:$0xff]
  %v28 = vld [vmem:[%s2 + $0x10] sm:$0xff]
  %v29 = vld [vmem:[%s2 + $0x18] sm:$0xff]
  %v30 = vld [vmem:[%s3] sm:$0xff]
  %v31 = vld [vmem:[%s3 + $0x8] sm:$0xff]
  %v32 = vld [vmem:[%s3 + $0x10] sm:$0xff]
  %v33 = vld [vmem:[%s3 + $0x18] sm:$0xff]
  %v34 = vld [vmem:[%s4] sm:$0xff]
  %v35 = vld [vmem:[%s4 + $0x8] sm:$0xff]
  %v36 = vld [vmem:[%s4 + $0x10] sm:$0xff]
  %v37 = vld [vmem:[%s4 + $0x18] sm:$0xff]
  %v38 = vld [vmem:[%s6] sm:$0x1]
  %v39 = vld [vmem:[%s0] sm:$0xff]
  %v40 = vld [vmem:[%s0 + $0x8] sm:$0xff]
  %v41 = vld [vmem:[%s0 + $0x10] sm:$0xff]
  %v42 = vld [vmem:[%s0 + $0x18] sm:$0xff]
  %v43 = vld [vmem:[%s1] sm:$0xff]
  %v44 = vld [vmem:[%s1 + $0x8] sm:$0xff]
  %v45 = vld [vmem:[%s1 + $0x10] sm:$0xff]
  %v46 = vld [vmem:[%s1 + $0x18] sm:$0xff]
  %v47 = vld [vmem:[%s5] sm:$0x1]
  %v49 = vlaneseq
  %v50 = vshrl.u32 %v49, 7
  %v51 = vsub.s32 0, %v50
  %v52 = vrot.slane %v47, %v51
  %vm54 = vcmask 261120
  %v56 = vsel %vm54, %v39, 0
  %v59 = vsel %vm54, %v40, 0
  %v62 = vsel %vm54, %v41, 0
  %v65 = vsel %vm54, %v42, 0
  %67 = vmatprep.subr.mxu0 0.0
  %68 = vmatpush1.msra.mxu0 0.0
  %69 = vmatprep.subr.mxu0 0.0
  %70 = vmatpush1.msra.mxu0 0.0
  %71 = vmatprep.subr.mxu0 0.0
  %72 = vmatpush1.msra.mxu0 0.0
  %73 = vmatprep.subr.mxu0 0.0
  %74 = vmatpush1.msra.mxu0 0.0
  %75 = vmatprep.subr.mxu0 0.0
  %76 = vmatpush1.msra.mxu0 0.0
  %77 = vmatprep.subr.mxu0 0.0
  %78 = vmatpush1.msra.mxu0 0.0
  %79 = vmatprep.subr.mxu0 0.0
  %80 = vmatpush1.msra.mxu0 0.0
  %81 = vmatprep.subr.mxu0 0.0
  %82 = vmatpush1.msra.mxu0 0.0
  %83 = vmatprep.subr.mxu0 0.0
  %84 = vmatpush1.msra.mxu0 0.0
  %85 = vmatprep.subr.mxu0 0.0
  %86 = vmatpush1.msra.mxu0 0.0
  %87 = vmatprep.subr.mxu0 0.0
  %88 = vmatpush1.msra.mxu0 0.0
  %89 = vmatprep.subr.mxu0 0.0
  %90 = vmatpush1.msra.mxu0 0.0
  %91 = vmatprep.subr.mxu0 0.0
  %92 = vmatpush1.msra.mxu0 %v46
  %93 = vmatprep.subr.mxu0 0.0
  %94 = vmatpush1.msra.mxu0 %v45
  %95 = vmatprep.subr.mxu0 0.0
  %96 = vmatpush1.msra.mxu0 %v44
  %97 = vmatprep.subr.mxu0 0.0
  %98 = vmatpush1.msra.mxu0 %v43
  %99 = vmatprep.subr.mxu0 0.0
  %100 = vmatpush2.msra.mxu0 0.0
  %101 = vmatprep.subr.mxu0 0.0
  %102 = vmatpush2.msra.mxu0 0.0
  %103 = vmatprep.subr.mxu0 0.0
  %104 = vmatpush2.msra.mxu0 0.0
  %105 = vmatprep.subr.mxu0 0.0
  %106 = vmatpush2.msra.mxu0 0.0
  %107 = vmatprep.subr.mxu0 0.0
  %108 = vmatpush2.msra.mxu0 0.0
  %109 = vmatprep.subr.mxu0 0.0
  %110 = vmatpush2.msra.mxu0 0.0
  %111 = vmatprep.subr.mxu0 0.0
  %112 = vmatpush2.msra.mxu0 0.0
  %113 = vmatprep.subr.mxu0 0.0
  %114 = vmatpush2.msra.mxu0 0.0
  %115 = vmatprep.subr.mxu0 0.0
  %116 = vmatpush2.msra.mxu0 0.0
  %117 = vmatprep.subr.mxu0 0.0
  %118 = vmatpush2.msra.mxu0 0.0
  %119 = vmatprep.subr.mxu0 0.0
  %120 = vmatpush2.msra.mxu0 0.0
  %121 = vmatprep.subr.mxu0 0.0
  %122 = vmatpush2.msra.mxu0 0.0
  %123 = vmatprep.subr.mxu0 0.0
  %124 = vmatpush2.msra.mxu0 0.0
  %125 = vmatprep.subr.mxu0 0.0
  %126 = vmatpush2.msra.mxu0 0.0
  %127 = vmatprep.subr.mxu0 0.0
  %128 = vmatpush2.msra.mxu0 0.0
  %129 = vmatprep.subr.mxu0 0.0
  %130 = vmatpush2.msra.mxu0 0.0
  %131 = vmatprep.mubr.f32.mxu0 0.0
  %132 = vmatmul.mubr.f32.gmra.mxu0 %v56
  %v133 = vpop.f32.mrf.mxu0
  %v134 = vadd.f32 %v52, %v133
  %v135 = vpop.f32.mrf.mxu0
  %136 = vmatprep.mubr.f32.mxu0 0.0
  %137 = vmatmul.mubr.f32.gmra.mxu0 %v59
  %v138 = vpop.f32.mrf.mxu0
  %v139 = vadd.f32 %v52, %v138
  %v140 = vpop.f32.mrf.mxu0
  %141 = vmatprep.mubr.f32.mxu0 0.0
  %142 = vmatmul.mubr.f32.gmra.mxu0 %v62
  %v143 = vpop.f32.mrf.mxu0
  %v144 = vadd.f32 %v52, %v143
  %v145 = vpop.f32.mrf.mxu0
  %146 = vmatprep.mubr.f32.mxu0 0.0
  %147 = vmatmul.mubr.f32.gmra.mxu0 %v65
  %v148 = vpop.f32.mrf.mxu0
  %v149 = vadd.f32 %v52, %v148
  %v150 = vpop.f32.mrf.mxu0
  %151 = vdwg.mxu0
  %v153 = vsel %vm54, 0.0, 0
  %155 = vmatprep.subr.mxu0 0.0
  %156 = vmatpush1.msra.mxu0 0.0
  %157 = vmatprep.subr.mxu0 0.0
  %158 = vmatpush1.msra.mxu0 0.0
  %159 = vmatprep.subr.mxu0 0.0
  %160 = vmatpush1.msra.mxu0 0.0
  %161 = vmatprep.subr.mxu0 0.0
  %162 = vmatpush1.msra.mxu0 0.0
  %163 = vmatprep.subr.mxu0 0.0
  %164 = vmatpush1.msra.mxu0 0.0
  %165 = vmatprep.subr.mxu0 0.0
  %166 = vmatpush1.msra.mxu0 0.0
  %167 = vmatprep.subr.mxu0 0.0
  %168 = vmatpush1.msra.mxu0 0.0
  %169 = vmatprep.subr.mxu0 0.0
  %170 = vmatpush1.msra.mxu0 0.0
  %171 = vmatprep.subr.mxu0 0.0
  %172 = vmatpush1.msra.mxu0 0.0
  %173 = vmatprep.subr.mxu0 0.0
  %174 = vmatpush1.msra.mxu0 0.0
  %175 = vmatprep.subr.mxu0 0.0
  %176 = vmatpush1.msra.mxu0 0.0
  %177 = vmatprep.subr.mxu0 0.0
  %178 = vmatpush1.msra.mxu0 0.0
  %179 = vmatprep.subr.mxu0 0.0
  %180 = vmatpush1.msra.mxu0 %v29
  %181 = vmatprep.subr.mxu0 0.0
  %182 = vmatpush1.msra.mxu0 %v28
  %183 = vmatprep.subr.mxu0 0.0
  %184 = vmatpush1.msra.mxu0 %v27
  %185 = vmatprep.subr.mxu0 0.0
  %186 = vmatpush1.msra.mxu0 %v26
  %187 = vmatprep.subr.mxu0 0.0
  %188 = vmatpush2.msra.mxu0 0.0
  %189 = vmatprep.subr.mxu0 0.0
  %190 = vmatpush2.msra.mxu0 0.0
  %191 = vmatprep.subr.mxu0 0.0
  %192 = vmatpush2.msra.mxu0 0.0
  %193 = vmatprep.subr.mxu0 0.0
  %194 = vmatpush2.msra.mxu0 0.0
  %195 = vmatprep.subr.mxu0 0.0
  %196 = vmatpush2.msra.mxu0 0.0
  %197 = vmatprep.subr.mxu0 0.0
  %198 = vmatpush2.msra.mxu0 0.0
  %199 = vmatprep.subr.mxu0 0.0
  %200 = vmatpush2.msra.mxu0 0.0
  %201 = vmatprep.subr.mxu0 0.0
  %202 = vmatpush2.msra.mxu0 0.0
  %203 = vmatprep.subr.mxu0 0.0
  %204 = vmatpush2.msra.mxu0 0.0
  %205 = vmatprep.subr.mxu0 0.0
  %206 = vmatpush2.msra.mxu0 0.0
  %207 = vmatprep.subr.mxu0 0.0
  %208 = vmatpush2.msra.mxu0 0.0
  %209 = vmatprep.subr.mxu0 0.0
  %210 = vmatpush2.msra.mxu0 0.0
  %211 = vmatprep.subr.mxu0 0.0
  %212 = vmatpush2.msra.mxu0 0.0
  %213 = vmatprep.subr.mxu0 0.0
  %214 = vmatpush2.msra.mxu0 0.0
  %215 = vmatprep.subr.mxu0 0.0
  %216 = vmatpush2.msra.mxu0 0.0
  %217 = vmatprep.subr.mxu0 0.0
  %218 = vmatpush2.msra.mxu0 0.0
  %219 = vmatprep.mubr.f32.mxu0 0.0
  %220 = vmatmul.mubr.f32.gmra.mxu0 %v153
  %v221 = vpop.f32.mrf.mxu0
  %v222 = vadd.f32 0.0, %v221
  %v223 = vpop.f32.mrf.mxu0
  %224 = vdwg.mxu0
  %225 = vmatprep.subr.mxu0 0.0
  %226 = vmatpush1.msra.mxu0 0.0
  %227 = vmatprep.subr.mxu0 0.0
  %228 = vmatpush1.msra.mxu0 0.0
  %229 = vmatprep.subr.mxu0 0.0
  %230 = vmatpush1.msra.mxu0 0.0
  %231 = vmatprep.subr.mxu0 0.0
  %232 = vmatpush1.msra.mxu0 0.0
  %233 = vmatprep.subr.mxu0 0.0
  %234 = vmatpush1.msra.mxu0 0.0
  %235 = vmatprep.subr.mxu0 0.0
  %236 = vmatpush1.msra.mxu0 0.0
  %237 = vmatprep.subr.mxu0 0.0
  %238 = vmatpush1.msra.mxu0 0.0
  %239 = vmatprep.subr.mxu0 0.0
  %240 = vmatpush1.msra.mxu0 0.0
  %241 = vmatprep.subr.mxu0 0.0
  %242 = vmatpush1.msra.mxu0 0.0
  %243 = vmatprep.subr.mxu0 0.0
  %244 = vmatpush1.msra.mxu0 0.0
  %245 = vmatprep.subr.mxu0 0.0
  %246 = vmatpush1.msra.mxu0 0.0
  %247 = vmatprep.subr.mxu0 0.0
  %248 = vmatpush1.msra.mxu0 0.0
  %249 = vmatprep.subr.mxu0 0.0
  %250 = vmatpush1.msra.mxu0 %v33
  %251 = vmatprep.subr.mxu0 0.0
  %252 = vmatpush1.msra.mxu0 %v32
  %253 = vmatprep.subr.mxu0 0.0
  %254 = vmatpush1.msra.mxu0 %v31
  %255 = vmatprep.subr.mxu0 0.0
  %256 = vmatpush1.msra.mxu0 %v30
  %257 = vmatprep.subr.mxu0 0.0
  %258 = vmatpush2.msra.mxu0 0.0
  %259 = vmatprep.subr.mxu0 0.0
  %260 = vmatpush2.msra.mxu0 0.0
  %261 = vmatprep.subr.mxu0 0.0
  %262 = vmatpush2.msra.mxu0 0.0
  %263 = vmatprep.subr.mxu0 0.0
  %264 = vmatpush2.msra.mxu0 0.0
  %265 = vmatprep.subr.mxu0 0.0
  %266 = vmatpush2.msra.mxu0 0.0
  %267 = vmatprep.subr.mxu0 0.0
  %268 = vmatpush2.msra.mxu0 0.0
  %269 = vmatprep.subr.mxu0 0.0
  %270 = vmatpush2.msra.mxu0 0.0
  %271 = vmatprep.subr.mxu0 0.0
  %272 = vmatpush2.msra.mxu0 0.0
  %273 = vmatprep.subr.mxu0 0.0
  %274 = vmatpush2.msra.mxu0 0.0
  %275 = vmatprep.subr.mxu0 0.0
  %276 = vmatpush2.msra.mxu0 0.0
  %277 = vmatprep.subr.mxu0 0.0
  %278 = vmatpush2.msra.mxu0 0.0
  %279 = vmatprep.subr.mxu0 0.0
  %280 = vmatpush2.msra.mxu0 0.0
  %281 = vmatprep.subr.mxu0 0.0
  %282 = vmatpush2.msra.mxu0 0.0
  %283 = vmatprep.subr.mxu0 0.0
  %284 = vmatpush2.msra.mxu0 0.0
  %285 = vmatprep.subr.mxu0 0.0
  %286 = vmatpush2.msra.mxu0 0.0
  %287 = vmatprep.subr.mxu0 0.0
  %288 = vmatpush2.msra.mxu0 0.0
  %289 = vmatprep.mubr.f32.mxu0 0.0
  %290 = vmatmul.mubr.f32.gmra.mxu0 %v153
  %v291 = vpop.f32.mrf.mxu0
  %v292 = vadd.f32 0.0, %v291
  %v293 = vpop.f32.mrf.mxu0
  %294 = vdwg.mxu0
  %v295 = vadd.f32 %v134, %v222
  %v296 = vxor.u32 %v295, 2147483648
  %v297 = vmul.f32 %v296, 1.442695
  %v298 = vpow.pop %v297
  %v299 = vadd.f32 %v298, 1.0
  %v300 = vrcp.pop %v299
  %v301 = vmul.f32 1.0, %v300
  %303 = vrot.lane.b32.xlu0 %v292, 32
  %v304 = vpop.permute.xlu0 %303
  %v306 = vadd.f32 %v134, %v304
  %v307 = vxor.u32 %v306, 2147483648
  %v308 = vmul.f32 %v307, 1.442695
  %v309 = vpow.pop %v308
  %v310 = vadd.f32 %v309, 1.0
  %v311 = vrcp.pop %v310
  %v312 = vmul.f32 1.0, %v311
  %v314 = vlaneseq
  %v315 = vshrl.u32 %v314, 7
  %v316 = vsub.s32 0, %v315
  %v317 = vrot.slane %v38, %v316
  %319 = vmatprep.subr.mxu0 0.0
  %320 = vmatpush1.msra.mxu0 0.0
  %321 = vmatprep.subr.mxu0 0.0
  %322 = vmatpush1.msra.mxu0 0.0
  %323 = vmatprep.subr.mxu0 0.0
  %324 = vmatpush1.msra.mxu0 0.0
  %325 = vmatprep.subr.mxu0 0.0
  %326 = vmatpush1.msra.mxu0 0.0
  %327 = vmatprep.subr.mxu0 0.0
  %328 = vmatpush1.msra.mxu0 0.0
  %329 = vmatprep.subr.mxu0 0.0
  %330 = vmatpush1.msra.mxu0 0.0
  %331 = vmatprep.subr.mxu0 0.0
  %332 = vmatpush1.msra.mxu0 0.0
  %333 = vmatprep.subr.mxu0 0.0
  %334 = vmatpush1.msra.mxu0 0.0
  %335 = vmatprep.subr.mxu0 0.0
  %336 = vmatpush1.msra.mxu0 0.0
  %337 = vmatprep.subr.mxu0 0.0
  %338 = vmatpush1.msra.mxu0 0.0
  %339 = vmatprep.subr.mxu0 0.0
  %340 = vmatpush1.msra.mxu0 0.0
  %341 = vmatprep.subr.mxu0 0.0
  %342 = vmatpush1.msra.mxu0 0.0
  %343 = vmatprep.subr.mxu0 0.0
  %344 = vmatpush1.msra.mxu0 %v37
  %345 = vmatprep.subr.mxu0 0.0
  %346 = vmatpush1.msra.mxu0 %v36
  %347 = vmatprep.subr.mxu0 0.0
  %348 = vmatpush1.msra.mxu0 %v35
  %349 = vmatprep.subr.mxu0 0.0
  %350 = vmatpush1.msra.mxu0 %v34
  %351 = vmatprep.subr.mxu0 0.0
  %352 = vmatpush2.msra.mxu0 0.0
  %353 = vmatprep.subr.mxu0 0.0
  %354 = vmatpush2.msra.mxu0 0.0
  %355 = vmatprep.subr.mxu0 0.0
  %356 = vmatpush2.msra.mxu0 0.0
  %357 = vmatprep.subr.mxu0 0.0
  %358 = vmatpush2.msra.mxu0 0.0
  %359 = vmatprep.subr.mxu0 0.0
  %360 = vmatpush2.msra.mxu0 0.0
  %361 = vmatprep.subr.mxu0 0.0
  %362 = vmatpush2.msra.mxu0 0.0
  %363 = vmatprep.subr.mxu0 0.0
  %364 = vmatpush2.msra.mxu0 0.0
  %365 = vmatprep.subr.mxu0 0.0
  %366 = vmatpush2.msra.mxu0 0.0
  %367 = vmatprep.subr.mxu0 0.0
  %368 = vmatpush2.msra.mxu0 0.0
  %369 = vmatprep.subr.mxu0 0.0
  %370 = vmatpush2.msra.mxu0 0.0
  %371 = vmatprep.subr.mxu0 0.0
  %372 = vmatpush2.msra.mxu0 0.0
  %373 = vmatprep.subr.mxu0 0.0
  %374 = vmatpush2.msra.mxu0 0.0
  %375 = vmatprep.subr.mxu0 0.0
  %376 = vmatpush2.msra.mxu0 0.0
  %377 = vmatprep.subr.mxu0 0.0
  %378 = vmatpush2.msra.mxu0 0.0
  %379 = vmatprep.subr.mxu0 0.0
  %380 = vmatpush2.msra.mxu0 0.0
  %381 = vmatprep.subr.mxu0 0.0
  %382 = vmatpush2.msra.mxu0 0.0
  %383 = vmatprep.mubr.f32.mxu0 0.0
  %384 = vmatmul.mubr.f32.gmra.mxu0 %v153
  %v385 = vpop.f32.mrf.mxu0
  %v386 = vadd.f32 %v317, %v385
  %v387 = vpop.f32.mrf.mxu0
  %388 = vdwg.mxu0
  %v389 = vmul.f32 %v301, %v386
  %391 = vrot.lane.b32.xlu0 %v389, 64
  %v392 = vpop.permute.xlu0 %391
  %v394 = vadd.f32 %v134, %v392
  %v395 = vtanh.pop %v394
  %v396 = vsub.f32 1.0, %v312
  %398 = vrot.lane.b32.xlu0 %v395, 96
  %v399 = vpop.permute.xlu0 %398
  %v401 = vmul.f32 %v396, %v399
  %v402 = vmul.f32 %v312, 0.0
  %v403 = vadd.f32 %v401, %v402
  %405 = vrot.lane.b32.xlu0 %v403, 96
  %v406 = vpop.permute.xlu0 %405
  %vm408 = vcmask 257024
  %409 = vst.msk [vmem:[%s7] sm:$0xf] %vm408, %v406
  %v410 = vsel %vm54, %v406, 0
  %412 = vmatprep.subr.mxu0 0.0
  %413 = vmatpush1.msra.mxu0 0.0
  %414 = vmatprep.subr.mxu0 0.0
  %415 = vmatpush1.msra.mxu0 0.0
  %416 = vmatprep.subr.mxu0 0.0
  %417 = vmatpush1.msra.mxu0 0.0
  %418 = vmatprep.subr.mxu0 0.0
  %419 = vmatpush1.msra.mxu0 0.0
  %420 = vmatprep.subr.mxu0 0.0
  %421 = vmatpush1.msra.mxu0 0.0
  %422 = vmatprep.subr.mxu0 0.0
  %423 = vmatpush1.msra.mxu0 0.0
  %424 = vmatprep.subr.mxu0 0.0
  %425 = vmatpush1.msra.mxu0 0.0
  %426 = vmatprep.subr.mxu0 0.0
  %427 = vmatpush1.msra.mxu0 0.0
  %428 = vmatprep.subr.mxu0 0.0
  %429 = vmatpush1.msra.mxu0 0.0
  %430 = vmatprep.subr.mxu0 0.0
  %431 = vmatpush1.msra.mxu0 0.0
  %432 = vmatprep.subr.mxu0 0.0
  %433 = vmatpush1.msra.mxu0 0.0
  %434 = vmatprep.subr.mxu0 0.0
  %435 = vmatpush1.msra.mxu0 0.0
  %436 = vmatprep.subr.mxu0 0.0
  %437 = vmatpush1.msra.mxu0 %v29
  %438 = vmatprep.subr.mxu0 0.0
  %439 = vmatpush1.msra.mxu0 %v28
  %440 = vmatprep.subr.mxu0 0.0
  %441 = vmatpush1.msra.mxu0 %v27
  %442 = vmatprep.subr.mxu0 0.0
  %443 = vmatpush1.msra.mxu0 %v26
  %444 = vmatprep.subr.mxu0 0.0
  %445 = vmatpush2.msra.mxu0 0.0
  %446 = vmatprep.subr.mxu0 0.0
  %447 = vmatpush2.msra.mxu0 0.0
  %448 = vmatprep.subr.mxu0 0.0
  %449 = vmatpush2.msra.mxu0 0.0
  %450 = vmatprep.subr.mxu0 0.0
  %451 = vmatpush2.msra.mxu0 0.0
  %452 = vmatprep.subr.mxu0 0.0
  %453 = vmatpush2.msra.mxu0 0.0
  %454 = vmatprep.subr.mxu0 0.0
  %455 = vmatpush2.msra.mxu0 0.0
  %456 = vmatprep.subr.mxu0 0.0
  %457 = vmatpush2.msra.mxu0 0.0
  %458 = vmatprep.subr.mxu0 0.0
  %459 = vmatpush2.msra.mxu0 0.0
  %460 = vmatprep.subr.mxu0 0.0
  %461 = vmatpush2.msra.mxu0 0.0
  %462 = vmatprep.subr.mxu0 0.0
  %463 = vmatpush2.msra.mxu0 0.0
  %464 = vmatprep.subr.mxu0 0.0
  %465 = vmatpush2.msra.mxu0 0.0
  %466 = vmatprep.subr.mxu0 0.0
  %467 = vmatpush2.msra.mxu0 0.0
  %468 = vmatprep.subr.mxu0 0.0
  %469 = vmatpush2.msra.mxu0 0.0
  %470 = vmatprep.subr.mxu0 0.0
  %471 = vmatpush2.msra.mxu0 0.0
  %472 = vmatprep.subr.mxu0 0.0
  %473 = vmatpush2.msra.mxu0 0.0
  %474 = vmatprep.subr.mxu0 0.0
  %475 = vmatpush2.msra.mxu0 0.0
  %476 = vmatprep.mubr.f32.mxu0 0.0
  %477 = vmatmul.mubr.f32.gmra.mxu0 %v410
  %v478 = vpop.f32.mrf.mxu0
  %v479 = vadd.f32 0.0, %v478
  %v480 = vpop.f32.mrf.mxu0
  %481 = vdwg.mxu0
  %482 = vmatprep.subr.mxu0 0.0
  %483 = vmatpush1.msra.mxu0 0.0
  %484 = vmatprep.subr.mxu0 0.0
  %485 = vmatpush1.msra.mxu0 0.0
  %486 = vmatprep.subr.mxu0 0.0
  %487 = vmatpush1.msra.mxu0 0.0
  %488 = vmatprep.subr.mxu0 0.0
  %489 = vmatpush1.msra.mxu0 0.0
  %490 = vmatprep.subr.mxu0 0.0
  %491 = vmatpush1.msra.mxu0 0.0
  %492 = vmatprep.subr.mxu0 0.0
  %493 = vmatpush1.msra.mxu0 0.0
  %494 = vmatprep.subr.mxu0 0.0
  %495 = vmatpush1.msra.mxu0 0.0
  %496 = vmatprep.subr.mxu0 0.0
  %497 = vmatpush1.msra.mxu0 0.0
  %498 = vmatprep.subr.mxu0 0.0
  %499 = vmatpush1.msra.mxu0 0.0
  %500 = vmatprep.subr.mxu0 0.0
  %501 = vmatpush1.msra.mxu0 0.0
  %502 = vmatprep.subr.mxu0 0.0
  %503 = vmatpush1.msra.mxu0 0.0
  %504 = vmatprep.subr.mxu0 0.0
  %505 = vmatpush1.msra.mxu0 0.0
  %506 = vmatprep.subr.mxu0 0.0
  %507 = vmatpush1.msra.mxu0 %v33
  %508 = vmatprep.subr.mxu0 0.0
  %509 = vmatpush1.msra.mxu0 %v32
  %510 = vmatprep.subr.mxu0 0.0
  %511 = vmatpush1.msra.mxu0 %v31
  %512 = vmatprep.subr.mxu0 0.0
  %513 = vmatpush1.msra.mxu0 %v30
  %514 = vmatprep.subr.mxu0 0.0
  %515 = vmatpush2.msra.mxu0 0.0
  %516 = vmatprep.subr.mxu0 0.0
  %517 = vmatpush2.msra.mxu0 0.0
  %518 = vmatprep.subr.mxu0 0.0
  %519 = vmatpush2.msra.mxu0 0.0
  %520 = vmatprep.subr.mxu0 0.0
  %521 = vmatpush2.msra.mxu0 0.0
  %522 = vmatprep.subr.mxu0 0.0
  %523 = vmatpush2.msra.mxu0 0.0
  %524 = vmatprep.subr.mxu0 0.0
  %525 = vmatpush2.msra.mxu0 0.0
  %526 = vmatprep.subr.mxu0 0.0
  %527 = vmatpush2.msra.mxu0 0.0
  %528 = vmatprep.subr.mxu0 0.0
  %529 = vmatpush2.msra.mxu0 0.0
  %530 = vmatprep.subr.mxu0 0.0
  %531 = vmatpush2.msra.mxu0 0.0
  %532 = vmatprep.subr.mxu0 0.0
  %533 = vmatpush2.msra.mxu0 0.0
  %534 = vmatprep.subr.mxu0 0.0
  %535 = vmatpush2.msra.mxu0 0.0
  %536 = vmatprep.subr.mxu0 0.0
  %537 = vmatpush2.msra.mxu0 0.0
  %538 = vmatprep.subr.mxu0 0.0
  %539 = vmatpush2.msra.mxu0 0.0
  %540 = vmatprep.subr.mxu0 0.0
  %541 = vmatpush2.msra.mxu0 0.0
  %542 = vmatprep.subr.mxu0 0.0
  %543 = vmatpush2.msra.mxu0 0.0
  %544 = vmatprep.subr.mxu0 0.0
  %545 = vmatpush2.msra.mxu0 0.0
  %546 = vmatprep.mubr.f32.mxu0 0.0
  %547 = vmatmul.mubr.f32.gmra.mxu0 %v410
  %v548 = vpop.f32.mrf.mxu0
  %v549 = vadd.f32 0.0, %v548
  %v550 = vpop.f32.mrf.mxu0
  %551 = vdwg.mxu0
  %v553 = vrot.slane %v479, 4
  %v555 = vadd.f32 %v134, %v553
  %v556 = vxor.u32 %v555, 2147483648
  %v557 = vmul.f32 %v556, 1.442695
  %v558 = vpow.pop %v557
  %v559 = vadd.f32 %v558, 1.0
  %v560 = vrcp.pop %v559
  %v561 = vmul.f32 1.0, %v560
  %v563 = vrot.slane %v549, 4
  %564 = vrot.lane.b32.xlu0 %v563, 32
  %v565 = vpop.permute.xlu0 %564
  %v567 = vadd.f32 %v134, %v565
  %v568 = vxor.u32 %v567, 2147483648
  %v569 = vmul.f32 %v568, 1.442695
  %v570 = vpow.pop %v569
  %v571 = vadd.f32 %v570, 1.0
  %v572 = vrcp.pop %v571
  %v573 = vmul.f32 1.0, %v572
  %574 = vmatprep.subr.mxu0 0.0
  %575 = vmatpush1.msra.mxu0 0.0
  %576 = vmatprep.subr.mxu0 0.0
  %577 = vmatpush1.msra.mxu0 0.0
  %578 = vmatprep.subr.mxu0 0.0
  %579 = vmatpush1.msra.mxu0 0.0
  %580 = vmatprep.subr.mxu0 0.0
  %581 = vmatpush1.msra.mxu0 0.0
  %582 = vmatprep.subr.mxu0 0.0
  %583 = vmatpush1.msra.mxu0 0.0
  %584 = vmatprep.subr.mxu0 0.0
  %585 = vmatpush1.msra.mxu0 0.0
  %586 = vmatprep.subr.mxu0 0.0
  %587 = vmatpush1.msra.mxu0 0.0
  %588 = vmatprep.subr.mxu0 0.0
  %589 = vmatpush1.msra.mxu0 0.0
  %590 = vmatprep.subr.mxu0 0.0
  %591 = vmatpush1.msra.mxu0 0.0
  %592 = vmatprep.subr.mxu0 0.0
  %593 = vmatpush1.msra.mxu0 0.0
  %594 = vmatprep.subr.mxu0 0.0
  %595 = vmatpush1.msra.mxu0 0.0
  %596 = vmatprep.subr.mxu0 0.0
  %597 = vmatpush1.msra.mxu0 0.0
  %598 = vmatprep.subr.mxu0 0.0
  %599 = vmatpush1.msra.mxu0 %v37
  %600 = vmatprep.subr.mxu0 0.0
  %601 = vmatpush1.msra.mxu0 %v36
  %602 = vmatprep.subr.mxu0 0.0
  %603 = vmatpush1.msra.mxu0 %v35
  %604 = vmatprep.subr.mxu0 0.0
  %605 = vmatpush1.msra.mxu0 %v34
  %606 = vmatprep.subr.mxu0 0.0
  %607 = vmatpush2.msra.mxu0 0.0
  %608 = vmatprep.subr.mxu0 0.0
  %609 = vmatpush2.msra.mxu0 0.0
  %610 = vmatprep.subr.mxu0 0.0
  %611 = vmatpush2.msra.mxu0 0.0
  %612 = vmatprep.subr.mxu0 0.0
  %613 = vmatpush2.msra.mxu0 0.0
  %614 = vmatprep.subr.mxu0 0.0
  %615 = vmatpush2.msra.mxu0 0.0
  %616 = vmatprep.subr.mxu0 0.0
  %617 = vmatpush2.msra.mxu0 0.0
  %618 = vmatprep.subr.mxu0 0.0
  %619 = vmatpush2.msra.mxu0 0.0
  %620 = vmatprep.subr.mxu0 0.0
  %621 = vmatpush2.msra.mxu0 0.0
  %622 = vmatprep.subr.mxu0 0.0
  %623 = vmatpush2.msra.mxu0 0.0
  %624 = vmatprep.subr.mxu0 0.0
  %625 = vmatpush2.msra.mxu0 0.0
  %626 = vmatprep.subr.mxu0 0.0
  %627 = vmatpush2.msra.mxu0 0.0
  %628 = vmatprep.subr.mxu0 0.0
  %629 = vmatpush2.msra.mxu0 0.0
  %630 = vmatprep.subr.mxu0 0.0
  %631 = vmatpush2.msra.mxu0 0.0
  %632 = vmatprep.subr.mxu0 0.0
  %633 = vmatpush2.msra.mxu0 0.0
  %634 = vmatprep.subr.mxu0 0.0
  %635 = vmatpush2.msra.mxu0 0.0
  %636 = vmatprep.subr.mxu0 0.0
  %637 = vmatpush2.msra.mxu0 0.0
  %638 = vmatprep.mubr.f32.mxu0 0.0
  %639 = vmatmul.mubr.f32.gmra.mxu0 %v410
  %v640 = vpop.f32.mrf.mxu0
  %v641 = vadd.f32 %v317, %v640
  %v642 = vpop.f32.mrf.mxu0
  %643 = vdwg.mxu0
  %v645 = vrot.slane %v641, 4
  %v647 = vmul.f32 %v561, %v645
  %649 = vrot.lane.b32.xlu0 %v647, 64
  %v650 = vpop.permute.xlu0 %649
  %v652 = vadd.f32 %v134, %v650
  %v653 = vtanh.pop %v652
  %v654 = vsub.f32 1.0, %v573
  %656 = vrot.lane.b32.xlu0 %v653, 96
  %v657 = vpop.permute.xlu0 %656
  %v659 = vmul.f32 %v654, %v657
  %v660 = vrot.slane %v403, 4
  %v662 = vmul.f32 %v573, %v660
  %v663 = vadd.f32 %v659, %v662
  %665 = vrot.lane.b32.xlu0 %v663, 96
  %v666 = vpop.permute.xlu0 %665
  %s668 = scalar_lea.vmem %s7, 4
  %vm669 = vcmask 261124
  %670 = vst.msk [vmem:[%s668 - $0x4] sm:$0xf0] %vm669, %v666
  %v671 = vrot.slane %v663, 4
  %672 = vrot.lane.b32.xlu0 %v671, 96
  %v673 = vpop.permute.xlu0 %672
  %v674 = vsel %vm54, %v673, 0
  %676 = vmatprep.subr.mxu0 0.0
  %677 = vmatpush1.msra.mxu0 0.0
  %678 = vmatprep.subr.mxu0 0.0
  %679 = vmatpush1.msra.mxu0 0.0
  %680 = vmatprep.subr.mxu0 0.0
  %681 = vmatpush1.msra.mxu0 0.0
  %682 = vmatprep.subr.mxu0 0.0
  %683 = vmatpush1.msra.mxu0 0.0
  %684 = vmatprep.subr.mxu0 0.0
  %685 = vmatpush1.msra.mxu0 0.0
  %686 = vmatprep.subr.mxu0 0.0
  %687 = vmatpush1.msra.mxu0 0.0
  %688 = vmatprep.subr.mxu0 0.0
  %689 = vmatpush1.msra.mxu0 0.0
  %690 = vmatprep.subr.mxu0 0.0
  %691 = vmatpush1.msra.mxu0 0.0
  %692 = vmatprep.subr.mxu0 0.0
  %693 = vmatpush1.msra.mxu0 0.0
  %694 = vmatprep.subr.mxu0 0.0
  %695 = vmatpush1.msra.mxu0 0.0
  %696 = vmatprep.subr.mxu0 0.0
  %697 = vmatpush1.msra.mxu0 0.0
  %698 = vmatprep.subr.mxu0 0.0
  %699 = vmatpush1.msra.mxu0 0.0
  %700 = vmatprep.subr.mxu0 0.0
  %701 = vmatpush1.msra.mxu0 %v29
  %702 = vmatprep.subr.mxu0 0.0
  %703 = vmatpush1.msra.mxu0 %v28
  %704 = vmatprep.subr.mxu0 0.0
  %705 = vmatpush1.msra.mxu0 %v27
  %706 = vmatprep.subr.mxu0 0.0
  %707 = vmatpush1.msra.mxu0 %v26
  %708 = vmatprep.subr.mxu0 0.0
  %709 = vmatpush2.msra.mxu0 0.0
  %710 = vmatprep.subr.mxu0 0.0
  %711 = vmatpush2.msra.mxu0 0.0
  %712 = vmatprep.subr.mxu0 0.0
  %713 = vmatpush2.msra.mxu0 0.0
  %714 = vmatprep.subr.mxu0 0.0
  %715 = vmatpush2.msra.mxu0 0.0
  %716 = vmatprep.subr.mxu0 0.0
  %717 = vmatpush2.msra.mxu0 0.0
  %718 = vmatprep.subr.mxu0 0.0
  %719 = vmatpush2.msra.mxu0 0.0
  %720 = vmatprep.subr.mxu0 0.0
  %721 = vmatpush2.msra.mxu0 0.0
  %722 = vmatprep.subr.mxu0 0.0
  %723 = vmatpush2.msra.mxu0 0.0
  %724 = vmatprep.subr.mxu0 0.0
  %725 = vmatpush2.msra.mxu0 0.0
  %726 = vmatprep.subr.mxu0 0.0
  %727 = vmatpush2.msra.mxu0 0.0
  %728 = vmatprep.subr.mxu0 0.0
  %729 = vmatpush2.msra.mxu0 0.0
  %730 = vmatprep.subr.mxu0 0.0
  %731 = vmatpush2.msra.mxu0 0.0
  %732 = vmatprep.subr.mxu0 0.0
  %733 = vmatpush2.msra.mxu0 0.0
  %734 = vmatprep.subr.mxu0 0.0
  %735 = vmatpush2.msra.mxu0 0.0
  %736 = vmatprep.subr.mxu0 0.0
  %737 = vmatpush2.msra.mxu0 0.0
  %738 = vmatprep.subr.mxu0 0.0
  %739 = vmatpush2.msra.mxu0 0.0
  %740 = vmatprep.mubr.f32.mxu0 0.0
  %741 = vmatmul.mubr.f32.gmra.mxu0 %v674
  %v742 = vpop.f32.mrf.mxu0
  %v743 = vadd.f32 0.0, %v742
  %v744 = vpop.f32.mrf.mxu0
  %745 = vdwg.mxu0
  %746 = vmatprep.subr.mxu0 0.0
  %747 = vmatpush1.msra.mxu0 0.0
  %748 = vmatprep.subr.mxu0 0.0
  %749 = vmatpush1.msra.mxu0 0.0
  %750 = vmatprep.subr.mxu0 0.0
  %751 = vmatpush1.msra.mxu0 0.0
  %752 = vmatprep.subr.mxu0 0.0
  %753 = vmatpush1.msra.mxu0 0.0
  %754 = vmatprep.subr.mxu0 0.0
  %755 = vmatpush1.msra.mxu0 0.0
  %756 = vmatprep.subr.mxu0 0.0
  %757 = vmatpush1.msra.mxu0 0.0
  %758 = vmatprep.subr.mxu0 0.0
  %759 = vmatpush1.msra.mxu0 0.0
  %760 = vmatprep.subr.mxu0 0.0
  %761 = vmatpush1.msra.mxu0 0.0
  %762 = vmatprep.subr.mxu0 0.0
  %763 = vmatpush1.msra.mxu0 0.0
  %764 = vmatprep.subr.mxu0 0.0
  %765 = vmatpush1.msra.mxu0 0.0
  %766 = vmatprep.subr.mxu0 0.0
  %767 = vmatpush1.msra.mxu0 0.0
  %768 = vmatprep.subr.mxu0 0.0
  %769 = vmatpush1.msra.mxu0 0.0
  %770 = vmatprep.subr.mxu0 0.0
  %771 = vmatpush1.msra.mxu0 %v33
  %772 = vmatprep.subr.mxu0 0.0
  %773 = vmatpush1.msra.mxu0 %v32
  %774 = vmatprep.subr.mxu0 0.0
  %775 = vmatpush1.msra.mxu0 %v31
  %776 = vmatprep.subr.mxu0 0.0
  %777 = vmatpush1.msra.mxu0 %v30
  %778 = vmatprep.subr.mxu0 0.0
  %779 = vmatpush2.msra.mxu0 0.0
  %780 = vmatprep.subr.mxu0 0.0
  %781 = vmatpush2.msra.mxu0 0.0
  %782 = vmatprep.subr.mxu0 0.0
  %783 = vmatpush2.msra.mxu0 0.0
  %784 = vmatprep.subr.mxu0 0.0
  %785 = vmatpush2.msra.mxu0 0.0
  %786 = vmatprep.subr.mxu0 0.0
  %787 = vmatpush2.msra.mxu0 0.0
  %788 = vmatprep.subr.mxu0 0.0
  %789 = vmatpush2.msra.mxu0 0.0
  %790 = vmatprep.subr.mxu0 0.0
  %791 = vmatpush2.msra.mxu0 0.0
  %792 = vmatprep.subr.mxu0 0.0
  %793 = vmatpush2.msra.mxu0 0.0
  %794 = vmatprep.subr.mxu0 0.0
  %795 = vmatpush2.msra.mxu0 0.0
  %796 = vmatprep.subr.mxu0 0.0
  %797 = vmatpush2.msra.mxu0 0.0
  %798 = vmatprep.subr.mxu0 0.0
  %799 = vmatpush2.msra.mxu0 0.0
  %800 = vmatprep.subr.mxu0 0.0
  %801 = vmatpush2.msra.mxu0 0.0
  %802 = vmatprep.subr.mxu0 0.0
  %803 = vmatpush2.msra.mxu0 0.0
  %804 = vmatprep.subr.mxu0 0.0
  %805 = vmatpush2.msra.mxu0 0.0
  %806 = vmatprep.subr.mxu0 0.0
  %807 = vmatpush2.msra.mxu0 0.0
  %808 = vmatprep.subr.mxu0 0.0
  %809 = vmatpush2.msra.mxu0 0.0
  %810 = vmatprep.mubr.f32.mxu0 0.0
  %811 = vmatmul.mubr.f32.gmra.mxu0 %v674
  %v812 = vpop.f32.mrf.mxu0
  %v813 = vadd.f32 0.0, %v812
  %v814 = vpop.f32.mrf.mxu0
  %815 = vdwg.mxu0
  %v816 = vadd.f32 %v139, %v743
  %v817 = vxor.u32 %v816, 2147483648
  %v818 = vmul.f32 %v817, 1.442695
  %v819 = vpow.pop %v818
  %v820 = vadd.f32 %v819, 1.0
  %v821 = vrcp.pop %v820
  %v822 = vmul.f32 1.0, %v821
  %824 = vrot.lane.b32.xlu0 %v813, 32
  %v825 = vpop.permute.xlu0 %824
  %v827 = vadd.f32 %v139, %v825
  %v828 = vxor.u32 %v827, 2147483648
  %v829 = vmul.f32 %v828, 1.442695
  %v830 = vpow.pop %v829
  %v831 = vadd.f32 %v830, 1.0
  %v832 = vrcp.pop %v831
  %v833 = vmul.f32 1.0, %v832
  %834 = vmatprep.subr.mxu0 0.0
  %835 = vmatpush1.msra.mxu0 0.0
  %836 = vmatprep.subr.mxu0 0.0
  %837 = vmatpush1.msra.mxu0 0.0
  %838 = vmatprep.subr.mxu0 0.0
  %839 = vmatpush1.msra.mxu0 0.0
  %840 = vmatprep.subr.mxu0 0.0
  %841 = vmatpush1.msra.mxu0 0.0
  %842 = vmatprep.subr.mxu0 0.0
  %843 = vmatpush1.msra.mxu0 0.0
  %844 = vmatprep.subr.mxu0 0.0
  %845 = vmatpush1.msra.mxu0 0.0
  %846 = vmatprep.subr.mxu0 0.0
  %847 = vmatpush1.msra.mxu0 0.0
  %848 = vmatprep.subr.mxu0 0.0
  %849 = vmatpush1.msra.mxu0 0.0
  %850 = vmatprep.subr.mxu0 0.0
  %851 = vmatpush1.msra.mxu0 0.0
  %852 = vmatprep.subr.mxu0 0.0
  %853 = vmatpush1.msra.mxu0 0.0
  %854 = vmatprep.subr.mxu0 0.0
  %855 = vmatpush1.msra.mxu0 0.0
  %856 = vmatprep.subr.mxu0 0.0
  %857 = vmatpush1.msra.mxu0 0.0
  %858 = vmatprep.subr.mxu0 0.0
  %859 = vmatpush1.msra.mxu0 %v37
  %860 = vmatprep.subr.mxu0 0.0
  %861 = vmatpush1.msra.mxu0 %v36
  %862 = vmatprep.subr.mxu0 0.0
  %863 = vmatpush1.msra.mxu0 %v35
  %864 = vmatprep.subr.mxu0 0.0
  %865 = vmatpush1.msra.mxu0 %v34
  %866 = vmatprep.subr.mxu0 0.0
  %867 = vmatpush2.msra.mxu0 0.0
  %868 = vmatprep.subr.mxu0 0.0
  %869 = vmatpush2.msra.mxu0 0.0
  %870 = vmatprep.subr.mxu0 0.0
  %871 = vmatpush2.msra.mxu0 0.0
  %872 = vmatprep.subr.mxu0 0.0
  %873 = vmatpush2.msra.mxu0 0.0
  %874 = vmatprep.subr.mxu0 0.0
  %875 = vmatpush2.msra.mxu0 0.0
  %876 = vmatprep.subr.mxu0 0.0
  %877 = vmatpush2.msra.mxu0 0.0
  %878 = vmatprep.subr.mxu0 0.0
  %879 = vmatpush2.msra.mxu0 0.0
  %880 = vmatprep.subr.mxu0 0.0
  %881 = vmatpush2.msra.mxu0 0.0
  %882 = vmatprep.subr.mxu0 0.0
  %883 = vmatpush2.msra.mxu0 0.0
  %884 = vmatprep.subr.mxu0 0.0
  %885 = vmatpush2.msra.mxu0 0.0
  %886 = vmatprep.subr.mxu0 0.0
  %887 = vmatpush2.msra.mxu0 0.0
  %888 = vmatprep.subr.mxu0 0.0
  %889 = vmatpush2.msra.mxu0 0.0
  %890 = vmatprep.subr.mxu0 0.0
  %891 = vmatpush2.msra.mxu0 0.0
  %892 = vmatprep.subr.mxu0 0.0
  %893 = vmatpush2.msra.mxu0 0.0
  %894 = vmatprep.subr.mxu0 0.0
  %895 = vmatpush2.msra.mxu0 0.0
  %896 = vmatprep.subr.mxu0 0.0
  %897 = vmatpush2.msra.mxu0 0.0
  %898 = vmatprep.mubr.f32.mxu0 0.0
  %899 = vmatmul.mubr.f32.gmra.mxu0 %v674
  %v900 = vpop.f32.mrf.mxu0
  %v901 = vadd.f32 %v317, %v900
  %v902 = vpop.f32.mrf.mxu0
  %903 = vdwg.mxu0
  %v904 = vmul.f32 %v822, %v901
  %906 = vrot.lane.b32.xlu0 %v904, 64
  %v907 = vpop.permute.xlu0 %906
  %v909 = vadd.f32 %v139, %v907
  %v910 = vtanh.pop %v909
  %v911 = vsub.f32 1.0, %v833
  %913 = vrot.lane.b32.xlu0 %v910, 96
  %v914 = vpop.permute.xlu0 %913
  %v916 = vmul.f32 %v911, %v914
  %v918 = vmul.f32 %v833, %v671
  %v919 = vadd.f32 %v916, %v918
  %921 = vrot.lane.b32.xlu0 %v919, 96
  %v922 = vpop.permute.xlu0 %921
  %s924 = scalar_lea.vmem %s7, 8
  %925 = vst.msk [vmem:[%s924] sm:$0xf] %vm408, %v922
  %v926 = vsel %vm54, %v922, 0
  %928 = vmatprep.subr.mxu0 0.0
  %929 = vmatpush1.msra.mxu0 0.0
  %930 = vmatprep.subr.mxu0 0.0
  %931 = vmatpush1.msra.mxu0 0.0
  %932 = vmatprep.subr.mxu0 0.0
  %933 = vmatpush1.msra.mxu0 0.0
  %934 = vmatprep.subr.mxu0 0.0
  %935 = vmatpush1.msra.mxu0 0.0
  %936 = vmatprep.subr.mxu0 0.0
  %937 = vmatpush1.msra.mxu0 0.0
  %938 = vmatprep.subr.mxu0 0.0
  %939 = vmatpush1.msra.mxu0 0.0
  %940 = vmatprep.subr.mxu0 0.0
  %941 = vmatpush1.msra.mxu0 0.0
  %942 = vmatprep.subr.mxu0 0.0
  %943 = vmatpush1.msra.mxu0 0.0
  %944 = vmatprep.subr.mxu0 0.0
  %945 = vmatpush1.msra.mxu0 0.0
  %946 = vmatprep.subr.mxu0 0.0
  %947 = vmatpush1.msra.mxu0 0.0
  %948 = vmatprep.subr.mxu0 0.0
  %949 = vmatpush1.msra.mxu0 0.0
  %950 = vmatprep.subr.mxu0 0.0
  %951 = vmatpush1.msra.mxu0 0.0
  %952 = vmatprep.subr.mxu0 0.0
  %953 = vmatpush1.msra.mxu0 %v29
  %954 = vmatprep.subr.mxu0 0.0
  %955 = vmatpush1.msra.mxu0 %v28
  %956 = vmatprep.subr.mxu0 0.0
  %957 = vmatpush1.msra.mxu0 %v27
  %958 = vmatprep.subr.mxu0 0.0
  %959 = vmatpush1.msra.mxu0 %v26
  %960 = vmatprep.subr.mxu0 0.0
  %961 = vmatpush2.msra.mxu0 0.0
  %962 = vmatprep.subr.mxu0 0.0
  %963 = vmatpush2.msra.mxu0 0.0
  %964 = vmatprep.subr.mxu0 0.0
  %965 = vmatpush2.msra.mxu0 0.0
  %966 = vmatprep.subr.mxu0 0.0
  %967 = vmatpush2.msra.mxu0 0.0
  %968 = vmatprep.subr.mxu0 0.0
  %969 = vmatpush2.msra.mxu0 0.0
  %970 = vmatprep.subr.mxu0 0.0
  %971 = vmatpush2.msra.mxu0 0.0
  %972 = vmatprep.subr.mxu0 0.0
  %973 = vmatpush2.msra.mxu0 0.0
  %974 = vmatprep.subr.mxu0 0.0
  %975 = vmatpush2.msra.mxu0 0.0
  %976 = vmatprep.subr.mxu0 0.0
  %977 = vmatpush2.msra.mxu0 0.0
  %978 = vmatprep.subr.mxu0 0.0
  %979 = vmatpush2.msra.mxu0 0.0
  %980 = vmatprep.subr.mxu0 0.0
  %981 = vmatpush2.msra.mxu0 0.0
  %982 = vmatprep.subr.mxu0 0.0
  %983 = vmatpush2.msra.mxu0 0.0
  %984 = vmatprep.subr.mxu0 0.0
  %985 = vmatpush2.msra.mxu0 0.0
  %986 = vmatprep.subr.mxu0 0.0
  %987 = vmatpush2.msra.mxu0 0.0
  %988 = vmatprep.subr.mxu0 0.0
  %989 = vmatpush2.msra.mxu0 0.0
  %990 = vmatprep.subr.mxu0 0.0
  %991 = vmatpush2.msra.mxu0 0.0
  %992 = vmatprep.mubr.f32.mxu0 0.0
  %993 = vmatmul.mubr.f32.gmra.mxu0 %v926
  %v994 = vpop.f32.mrf.mxu0
  %v995 = vadd.f32 0.0, %v994
  %v996 = vpop.f32.mrf.mxu0
  %997 = vdwg.mxu0
  %998 = vmatprep.subr.mxu0 0.0
  %999 = vmatpush1.msra.mxu0 0.0
  %1000 = vmatprep.subr.mxu0 0.0
  %1001 = vmatpush1.msra.mxu0 0.0
  %1002 = vmatprep.subr.mxu0 0.0
  %1003 = vmatpush1.msra.mxu0 0.0
  %1004 = vmatprep.subr.mxu0 0.0
  %1005 = vmatpush1.msra.mxu0 0.0
  %1006 = vmatprep.subr.mxu0 0.0
  %1007 = vmatpush1.msra.mxu0 0.0
  %1008 = vmatprep.subr.mxu0 0.0
  %1009 = vmatpush1.msra.mxu0 0.0
  %1010 = vmatprep.subr.mxu0 0.0
  %1011 = vmatpush1.msra.mxu0 0.0
  %1012 = vmatprep.subr.mxu0 0.0
  %1013 = vmatpush1.msra.mxu0 0.0
  %1014 = vmatprep.subr.mxu0 0.0
  %1015 = vmatpush1.msra.mxu0 0.0
  %1016 = vmatprep.subr.mxu0 0.0
  %1017 = vmatpush1.msra.mxu0 0.0
  %1018 = vmatprep.subr.mxu0 0.0
  %1019 = vmatpush1.msra.mxu0 0.0
  %1020 = vmatprep.subr.mxu0 0.0
  %1021 = vmatpush1.msra.mxu0 0.0
  %1022 = vmatprep.subr.mxu0 0.0
  %1023 = vmatpush1.msra.mxu0 %v33
  %1024 = vmatprep.subr.mxu0 0.0
  %1025 = vmatpush1.msra.mxu0 %v32
  %1026 = vmatprep.subr.mxu0 0.0
  %1027 = vmatpush1.msra.mxu0 %v31
  %1028 = vmatprep.subr.mxu0 0.0
  %1029 = vmatpush1.msra.mxu0 %v30
  %1030 = vmatprep.subr.mxu0 0.0
  %1031 = vmatpush2.msra.mxu0 0.0
  %1032 = vmatprep.subr.mxu0 0.0
  %1033 = vmatpush2.msra.mxu0 0.0
  %1034 = vmatprep.subr.mxu0 0.0
  %1035 = vmatpush2.msra.mxu0 0.0
  %1036 = vmatprep.subr.mxu0 0.0
  %1037 = vmatpush2.msra.mxu0 0.0
  %1038 = vmatprep.subr.mxu0 0.0
  %1039 = vmatpush2.msra.mxu0 0.0
  %1040 = vmatprep.subr.mxu0 0.0
  %1041 = vmatpush2.msra.mxu0 0.0
  %1042 = vmatprep.subr.mxu0 0.0
  %1043 = vmatpush2.msra.mxu0 0.0
  %1044 = vmatprep.subr.mxu0 0.0
  %1045 = vmatpush2.msra.mxu0 0.0
  %1046 = vmatprep.subr.mxu0 0.0
  %1047 = vmatpush2.msra.mxu0 0.0
  %1048 = vmatprep.subr.mxu0 0.0
  %1049 = vmatpush2.msra.mxu0 0.0
  %1050 = vmatprep.subr.mxu0 0.0
  %1051 = vmatpush2.msra.mxu0 0.0
  %1052 = vmatprep.subr.mxu0 0.0
  %1053 = vmatpush2.msra.mxu0 0.0
  %1054 = vmatprep.subr.mxu0 0.0
  %1055 = vmatpush2.msra.mxu0 0.0
  %1056 = vmatprep.subr.mxu0 0.0
  %1057 = vmatpush2.msra.mxu0 0.0
  %1058 = vmatprep.subr.mxu0 0.0
  %1059 = vmatpush2.msra.mxu0 0.0
  %1060 = vmatprep.subr.mxu0 0.0
  %1061 = vmatpush2.msra.mxu0 0.0
  %1062 = vmatprep.mubr.f32.mxu0 0.0
  %1063 = vmatmul.mubr.f32.gmra.mxu0 %v926
  %v1064 = vpop.f32.mrf.mxu0
  %v1065 = vadd.f32 0.0, %v1064
  %v1066 = vpop.f32.mrf.mxu0
  %1067 = vdwg.mxu0
  %v1069 = vrot.slane %v995, 4
  %v1071 = vadd.f32 %v139, %v1069
  %v1072 = vxor.u32 %v1071, 2147483648
  %v1073 = vmul.f32 %v1072, 1.442695
  %v1074 = vpow.pop %v1073
  %v1075 = vadd.f32 %v1074, 1.0
  %v1076 = vrcp.pop %v1075
  %v1077 = vmul.f32 1.0, %v1076
  %v1079 = vrot.slane %v1065, 4
  %1080 = vrot.lane.b32.xlu0 %v1079, 32
  %v1081 = vpop.permute.xlu0 %1080
  %v1083 = vadd.f32 %v139, %v1081
  %v1084 = vxor.u32 %v1083, 2147483648
  %v1085 = vmul.f32 %v1084, 1.442695
  %v1086 = vpow.pop %v1085
  %v1087 = vadd.f32 %v1086, 1.0
  %v1088 = vrcp.pop %v1087
  %v1089 = vmul.f32 1.0, %v1088
  %1090 = vmatprep.subr.mxu0 0.0
  %1091 = vmatpush1.msra.mxu0 0.0
  %1092 = vmatprep.subr.mxu0 0.0
  %1093 = vmatpush1.msra.mxu0 0.0
  %1094 = vmatprep.subr.mxu0 0.0
  %1095 = vmatpush1.msra.mxu0 0.0
  %1096 = vmatprep.subr.mxu0 0.0
  %1097 = vmatpush1.msra.mxu0 0.0
  %1098 = vmatprep.subr.mxu0 0.0
  %1099 = vmatpush1.msra.mxu0 0.0
  %1100 = vmatprep.subr.mxu0 0.0
  %1101 = vmatpush1.msra.mxu0 0.0
  %1102 = vmatprep.subr.mxu0 0.0
  %1103 = vmatpush1.msra.mxu0 0.0
  %1104 = vmatprep.subr.mxu0 0.0
  %1105 = vmatpush1.msra.mxu0 0.0
  %1106 = vmatprep.subr.mxu0 0.0
  %1107 = vmatpush1.msra.mxu0 0.0
  %1108 = vmatprep.subr.mxu0 0.0
  %1109 = vmatpush1.msra.mxu0 0.0
  %1110 = vmatprep.subr.mxu0 0.0
  %1111 = vmatpush1.msra.mxu0 0.0
  %1112 = vmatprep.subr.mxu0 0.0
  %1113 = vmatpush1.msra.mxu0 0.0
  %1114 = vmatprep.subr.mxu0 0.0
  %1115 = vmatpush1.msra.mxu0 %v37
  %1116 = vmatprep.subr.mxu0 0.0
  %1117 = vmatpush1.msra.mxu0 %v36
  %1118 = vmatprep.subr.mxu0 0.0
  %1119 = vmatpush1.msra.mxu0 %v35
  %1120 = vmatprep.subr.mxu0 0.0
  %1121 = vmatpush1.msra.mxu0 %v34
  %1122 = vmatprep.subr.mxu0 0.0
  %1123 = vmatpush2.msra.mxu0 0.0
  %1124 = vmatprep.subr.mxu0 0.0
  %1125 = vmatpush2.msra.mxu0 0.0
  %1126 = vmatprep.subr.mxu0 0.0
  %1127 = vmatpush2.msra.mxu0 0.0
  %1128 = vmatprep.subr.mxu0 0.0
  %1129 = vmatpush2.msra.mxu0 0.0
  %1130 = vmatprep.subr.mxu0 0.0
  %1131 = vmatpush2.msra.mxu0 0.0
  %1132 = vmatprep.subr.mxu0 0.0
  %1133 = vmatpush2.msra.mxu0 0.0
  %1134 = vmatprep.subr.mxu0 0.0
  %1135 = vmatpush2.msra.mxu0 0.0
  %1136 = vmatprep.subr.mxu0 0.0
  %1137 = vmatpush2.msra.mxu0 0.0
  %1138 = vmatprep.subr.mxu0 0.0
  %1139 = vmatpush2.msra.mxu0 0.0
  %1140 = vmatprep.subr.mxu0 0.0
  %1141 = vmatpush2.msra.mxu0 0.0
  %1142 = vmatprep.subr.mxu0 0.0
  %1143 = vmatpush2.msra.mxu0 0.0
  %1144 = vmatprep.subr.mxu0 0.0
  %1145 = vmatpush2.msra.mxu0 0.0
  %1146 = vmatprep.subr.mxu0 0.0
  %1147 = vmatpush2.msra.mxu0 0.0
  %1148 = vmatprep.subr.mxu0 0.0
  %1149 = vmatpush2.msra.mxu0 0.0
  %1150 = vmatprep.subr.mxu0 0.0
  %1151 = vmatpush2.msra.mxu0 0.0
  %1152 = vmatprep.subr.mxu0 0.0
  %1153 = vmatpush2.msra.mxu0 0.0
  %1154 = vmatprep.mubr.f32.mxu0 0.0
  %1155 = vmatmul.mubr.f32.gmra.mxu0 %v926
  %v1156 = vpop.f32.mrf.mxu0
  %v1157 = vadd.f32 %v317, %v1156
  %v1158 = vpop.f32.mrf.mxu0
  %1159 = vdwg.mxu0
  %v1161 = vrot.slane %v1157, 4
  %v1163 = vmul.f32 %v1077, %v1161
  %1165 = vrot.lane.b32.xlu0 %v1163, 64
  %v1166 = vpop.permute.xlu0 %1165
  %v1168 = vadd.f32 %v139, %v1166
  %v1169 = vtanh.pop %v1168
  %v1170 = vsub.f32 1.0, %v1089
  %1172 = vrot.lane.b32.xlu0 %v1169, 96
  %v1173 = vpop.permute.xlu0 %1172
  %v1175 = vmul.f32 %v1170, %v1173
  %v1176 = vrot.slane %v919, 4
  %v1178 = vmul.f32 %v1089, %v1176
  %v1179 = vadd.f32 %v1175, %v1178
  %1181 = vrot.lane.b32.xlu0 %v1179, 96
  %v1182 = vpop.permute.xlu0 %1181
  %s1184 = scalar_lea.vmem %s7, 12
  %1185 = vst.msk [vmem:[%s1184 - $0x4] sm:$0xf0] %vm669, %v1182
  %v1186 = vrot.slane %v1179, 4
  %1187 = vrot.lane.b32.xlu0 %v1186, 96
  %v1188 = vpop.permute.xlu0 %1187
  %v1189 = vsel %vm54, %v1188, 0
  %1191 = vmatprep.subr.mxu0 0.0
  %1192 = vmatpush1.msra.mxu0 0.0
  %1193 = vmatprep.subr.mxu0 0.0
  %1194 = vmatpush1.msra.mxu0 0.0
  %1195 = vmatprep.subr.mxu0 0.0
  %1196 = vmatpush1.msra.mxu0 0.0
  %1197 = vmatprep.subr.mxu0 0.0
  %1198 = vmatpush1.msra.mxu0 0.0
  %1199 = vmatprep.subr.mxu0 0.0
  %1200 = vmatpush1.msra.mxu0 0.0
  %1201 = vmatprep.subr.mxu0 0.0
  %1202 = vmatpush1.msra.mxu0 0.0
  %1203 = vmatprep.subr.mxu0 0.0
  %1204 = vmatpush1.msra.mxu0 0.0
  %1205 = vmatprep.subr.mxu0 0.0
  %1206 = vmatpush1.msra.mxu0 0.0
  %1207 = vmatprep.subr.mxu0 0.0
  %1208 = vmatpush1.msra.mxu0 0.0
  %1209 = vmatprep.subr.mxu0 0.0
  %1210 = vmatpush1.msra.mxu0 0.0
  %1211 = vmatprep.subr.mxu0 0.0
  %1212 = vmatpush1.msra.mxu0 0.0
  %1213 = vmatprep.subr.mxu0 0.0
  %1214 = vmatpush1.msra.mxu0 0.0
  %1215 = vmatprep.subr.mxu0 0.0
  %1216 = vmatpush1.msra.mxu0 %v29
  %1217 = vmatprep.subr.mxu0 0.0
  %1218 = vmatpush1.msra.mxu0 %v28
  %1219 = vmatprep.subr.mxu0 0.0
  %1220 = vmatpush1.msra.mxu0 %v27
  %1221 = vmatprep.subr.mxu0 0.0
  %1222 = vmatpush1.msra.mxu0 %v26
  %1223 = vmatprep.subr.mxu0 0.0
  %1224 = vmatpush2.msra.mxu0 0.0
  %1225 = vmatprep.subr.mxu0 0.0
  %1226 = vmatpush2.msra.mxu0 0.0
  %1227 = vmatprep.subr.mxu0 0.0
  %1228 = vmatpush2.msra.mxu0 0.0
  %1229 = vmatprep.subr.mxu0 0.0
  %1230 = vmatpush2.msra.mxu0 0.0
  %1231 = vmatprep.subr.mxu0 0.0
  %1232 = vmatpush2.msra.mxu0 0.0
  %1233 = vmatprep.subr.mxu0 0.0
  %1234 = vmatpush2.msra.mxu0 0.0
  %1235 = vmatprep.subr.mxu0 0.0
  %1236 = vmatpush2.msra.mxu0 0.0
  %1237 = vmatprep.subr.mxu0 0.0
  %1238 = vmatpush2.msra.mxu0 0.0
  %1239 = vmatprep.subr.mxu0 0.0
  %1240 = vmatpush2.msra.mxu0 0.0
  %1241 = vmatprep.subr.mxu0 0.0
  %1242 = vmatpush2.msra.mxu0 0.0
  %1243 = vmatprep.subr.mxu0 0.0
  %1244 = vmatpush2.msra.mxu0 0.0
  %1245 = vmatprep.subr.mxu0 0.0
  %1246 = vmatpush2.msra.mxu0 0.0
  %1247 = vmatprep.subr.mxu0 0.0
  %1248 = vmatpush2.msra.mxu0 0.0
  %1249 = vmatprep.subr.mxu0 0.0
  %1250 = vmatpush2.msra.mxu0 0.0
  %1251 = vmatprep.subr.mxu0 0.0
  %1252 = vmatpush2.msra.mxu0 0.0
  %1253 = vmatprep.subr.mxu0 0.0
  %1254 = vmatpush2.msra.mxu0 0.0
  %1255 = vmatprep.mubr.f32.mxu0 0.0
  %1256 = vmatmul.mubr.f32.gmra.mxu0 %v1189
  %v1257 = vpop.f32.mrf.mxu0
  %v1258 = vadd.f32 0.0, %v1257
  %v1259 = vpop.f32.mrf.mxu0
  %1260 = vdwg.mxu0
  %1261 = vmatprep.subr.mxu0 0.0
  %1262 = vmatpush1.msra.mxu0 0.0
  %1263 = vmatprep.subr.mxu0 0.0
  %1264 = vmatpush1.msra.mxu0 0.0
  %1265 = vmatprep.subr.mxu0 0.0
  %1266 = vmatpush1.msra.mxu0 0.0
  %1267 = vmatprep.subr.mxu0 0.0
  %1268 = vmatpush1.msra.mxu0 0.0
  %1269 = vmatprep.subr.mxu0 0.0
  %1270 = vmatpush1.msra.mxu0 0.0
  %1271 = vmatprep.subr.mxu0 0.0
  %1272 = vmatpush1.msra.mxu0 0.0
  %1273 = vmatprep.subr.mxu0 0.0
  %1274 = vmatpush1.msra.mxu0 0.0
  %1275 = vmatprep.subr.mxu0 0.0
  %1276 = vmatpush1.msra.mxu0 0.0
  %1277 = vmatprep.subr.mxu0 0.0
  %1278 = vmatpush1.msra.mxu0 0.0
  %1279 = vmatprep.subr.mxu0 0.0
  %1280 = vmatpush1.msra.mxu0 0.0
  %1281 = vmatprep.subr.mxu0 0.0
  %1282 = vmatpush1.msra.mxu0 0.0
  %1283 = vmatprep.subr.mxu0 0.0
  %1284 = vmatpush1.msra.mxu0 0.0
  %1285 = vmatprep.subr.mxu0 0.0
  %1286 = vmatpush1.msra.mxu0 %v33
  %1287 = vmatprep.subr.mxu0 0.0
  %1288 = vmatpush1.msra.mxu0 %v32
  %1289 = vmatprep.subr.mxu0 0.0
  %1290 = vmatpush1.msra.mxu0 %v31
  %1291 = vmatprep.subr.mxu0 0.0
  %1292 = vmatpush1.msra.mxu0 %v30
  %1293 = vmatprep.subr.mxu0 0.0
  %1294 = vmatpush2.msra.mxu0 0.0
  %1295 = vmatprep.subr.mxu0 0.0
  %1296 = vmatpush2.msra.mxu0 0.0
  %1297 = vmatprep.subr.mxu0 0.0
  %1298 = vmatpush2.msra.mxu0 0.0
  %1299 = vmatprep.subr.mxu0 0.0
  %1300 = vmatpush2.msra.mxu0 0.0
  %1301 = vmatprep.subr.mxu0 0.0
  %1302 = vmatpush2.msra.mxu0 0.0
  %1303 = vmatprep.subr.mxu0 0.0
  %1304 = vmatpush2.msra.mxu0 0.0
  %1305 = vmatprep.subr.mxu0 0.0
  %1306 = vmatpush2.msra.mxu0 0.0
  %1307 = vmatprep.subr.mxu0 0.0
  %1308 = vmatpush2.msra.mxu0 0.0
  %1309 = vmatprep.subr.mxu0 0.0
  %1310 = vmatpush2.msra.mxu0 0.0
  %1311 = vmatprep.subr.mxu0 0.0
  %1312 = vmatpush2.msra.mxu0 0.0
  %1313 = vmatprep.subr.mxu0 0.0
  %1314 = vmatpush2.msra.mxu0 0.0
  %1315 = vmatprep.subr.mxu0 0.0
  %1316 = vmatpush2.msra.mxu0 0.0
  %1317 = vmatprep.subr.mxu0 0.0
  %1318 = vmatpush2.msra.mxu0 0.0
  %1319 = vmatprep.subr.mxu0 0.0
  %1320 = vmatpush2.msra.mxu0 0.0
  %1321 = vmatprep.subr.mxu0 0.0
  %1322 = vmatpush2.msra.mxu0 0.0
  %1323 = vmatprep.subr.mxu0 0.0
  %1324 = vmatpush2.msra.mxu0 0.0
  %1325 = vmatprep.mubr.f32.mxu0 0.0
  %1326 = vmatmul.mubr.f32.gmra.mxu0 %v1189
  %v1327 = vpop.f32.mrf.mxu0
  %v1328 = vadd.f32 0.0, %v1327
  %v1329 = vpop.f32.mrf.mxu0
  %1330 = vdwg.mxu0
  %v1331 = vadd.f32 %v144, %v1258
  %v1332 = vxor.u32 %v1331, 2147483648
  %v1333 = vmul.f32 %v1332, 1.442695
  %v1334 = vpow.pop %v1333
  %v1335 = vadd.f32 %v1334, 1.0
  %v1336 = vrcp.pop %v1335
  %v1337 = vmul.f32 1.0, %v1336
  %1339 = vrot.lane.b32.xlu0 %v1328, 32
  %v1340 = vpop.permute.xlu0 %1339
  %v1342 = vadd.f32 %v144, %v1340
  %v1343 = vxor.u32 %v1342, 2147483648
  %v1344 = vmul.f32 %v1343, 1.442695
  %v1345 = vpow.pop %v1344
  %v1346 = vadd.f32 %v1345, 1.0
  %v1347 = vrcp.pop %v1346
  %v1348 = vmul.f32 1.0, %v1347
  %1349 = vmatprep.subr.mxu0 0.0
  %1350 = vmatpush1.msra.mxu0 0.0
  %1351 = vmatprep.subr.mxu0 0.0
  %1352 = vmatpush1.msra.mxu0 0.0
  %1353 = vmatprep.subr.mxu0 0.0
  %1354 = vmatpush1.msra.mxu0 0.0
  %1355 = vmatprep.subr.mxu0 0.0
  %1356 = vmatpush1.msra.mxu0 0.0
  %1357 = vmatprep.subr.mxu0 0.0
  %1358 = vmatpush1.msra.mxu0 0.0
  %1359 = vmatprep.subr.mxu0 0.0
  %1360 = vmatpush1.msra.mxu0 0.0
  %1361 = vmatprep.subr.mxu0 0.0
  %1362 = vmatpush1.msra.mxu0 0.0
  %1363 = vmatprep.subr.mxu0 0.0
  %1364 = vmatpush1.msra.mxu0 0.0
  %1365 = vmatprep.subr.mxu0 0.0
  %1366 = vmatpush1.msra.mxu0 0.0
  %1367 = vmatprep.subr.mxu0 0.0
  %1368 = vmatpush1.msra.mxu0 0.0
  %1369 = vmatprep.subr.mxu0 0.0
  %1370 = vmatpush1.msra.mxu0 0.0
  %1371 = vmatprep.subr.mxu0 0.0
  %1372 = vmatpush1.msra.mxu0 0.0
  %1373 = vmatprep.subr.mxu0 0.0
  %1374 = vmatpush1.msra.mxu0 %v37
  %1375 = vmatprep.subr.mxu0 0.0
  %1376 = vmatpush1.msra.mxu0 %v36
  %1377 = vmatprep.subr.mxu0 0.0
  %1378 = vmatpush1.msra.mxu0 %v35
  %1379 = vmatprep.subr.mxu0 0.0
  %1380 = vmatpush1.msra.mxu0 %v34
  %1381 = vmatprep.subr.mxu0 0.0
  %1382 = vmatpush2.msra.mxu0 0.0
  %1383 = vmatprep.subr.mxu0 0.0
  %1384 = vmatpush2.msra.mxu0 0.0
  %1385 = vmatprep.subr.mxu0 0.0
  %1386 = vmatpush2.msra.mxu0 0.0
  %1387 = vmatprep.subr.mxu0 0.0
  %1388 = vmatpush2.msra.mxu0 0.0
  %1389 = vmatprep.subr.mxu0 0.0
  %1390 = vmatpush2.msra.mxu0 0.0
  %1391 = vmatprep.subr.mxu0 0.0
  %1392 = vmatpush2.msra.mxu0 0.0
  %1393 = vmatprep.subr.mxu0 0.0
  %1394 = vmatpush2.msra.mxu0 0.0
  %1395 = vmatprep.subr.mxu0 0.0
  %1396 = vmatpush2.msra.mxu0 0.0
  %1397 = vmatprep.subr.mxu0 0.0
  %1398 = vmatpush2.msra.mxu0 0.0
  %1399 = vmatprep.subr.mxu0 0.0
  %1400 = vmatpush2.msra.mxu0 0.0
  %1401 = vmatprep.subr.mxu0 0.0
  %1402 = vmatpush2.msra.mxu0 0.0
  %1403 = vmatprep.subr.mxu0 0.0
  %1404 = vmatpush2.msra.mxu0 0.0
  %1405 = vmatprep.subr.mxu0 0.0
  %1406 = vmatpush2.msra.mxu0 0.0
  %1407 = vmatprep.subr.mxu0 0.0
  %1408 = vmatpush2.msra.mxu0 0.0
  %1409 = vmatprep.subr.mxu0 0.0
  %1410 = vmatpush2.msra.mxu0 0.0
  %1411 = vmatprep.subr.mxu0 0.0
  %1412 = vmatpush2.msra.mxu0 0.0
  %1413 = vmatprep.mubr.f32.mxu0 0.0
  %1414 = vmatmul.mubr.f32.gmra.mxu0 %v1189
  %v1415 = vpop.f32.mrf.mxu0
  %v1416 = vadd.f32 %v317, %v1415
  %v1417 = vpop.f32.mrf.mxu0
  %1418 = vdwg.mxu0
  %v1419 = vmul.f32 %v1337, %v1416
  %1421 = vrot.lane.b32.xlu0 %v1419, 64
  %v1422 = vpop.permute.xlu0 %1421
  %v1424 = vadd.f32 %v144, %v1422
  %v1425 = vtanh.pop %v1424
  %v1426 = vsub.f32 1.0, %v1348
  %1428 = vrot.lane.b32.xlu0 %v1425, 96
  %v1429 = vpop.permute.xlu0 %1428
  %v1431 = vmul.f32 %v1426, %v1429
  %v1433 = vmul.f32 %v1348, %v1186
  %v1434 = vadd.f32 %v1431, %v1433
  %1436 = vrot.lane.b32.xlu0 %v1434, 96
  %v1437 = vpop.permute.xlu0 %1436
  %s1439 = scalar_lea.vmem %s7, 16
  %1440 = vst.msk [vmem:[%s1439] sm:$0xf] %vm408, %v1437
  %v1441 = vsel %vm54, %v1437, 0
  %1443 = vmatprep.subr.mxu0 0.0
  %1444 = vmatpush1.msra.mxu0 0.0
  %1445 = vmatprep.subr.mxu0 0.0
  %1446 = vmatpush1.msra.mxu0 0.0
  %1447 = vmatprep.subr.mxu0 0.0
  %1448 = vmatpush1.msra.mxu0 0.0
  %1449 = vmatprep.subr.mxu0 0.0
  %1450 = vmatpush1.msra.mxu0 0.0
  %1451 = vmatprep.subr.mxu0 0.0
  %1452 = vmatpush1.msra.mxu0 0.0
  %1453 = vmatprep.subr.mxu0 0.0
  %1454 = vmatpush1.msra.mxu0 0.0
  %1455 = vmatprep.subr.mxu0 0.0
  %1456 = vmatpush1.msra.mxu0 0.0
  %1457 = vmatprep.subr.mxu0 0.0
  %1458 = vmatpush1.msra.mxu0 0.0
  %1459 = vmatprep.subr.mxu0 0.0
  %1460 = vmatpush1.msra.mxu0 0.0
  %1461 = vmatprep.subr.mxu0 0.0
  %1462 = vmatpush1.msra.mxu0 0.0
  %1463 = vmatprep.subr.mxu0 0.0
  %1464 = vmatpush1.msra.mxu0 0.0
  %1465 = vmatprep.subr.mxu0 0.0
  %1466 = vmatpush1.msra.mxu0 0.0
  %1467 = vmatprep.subr.mxu0 0.0
  %1468 = vmatpush1.msra.mxu0 %v29
  %1469 = vmatprep.subr.mxu0 0.0
  %1470 = vmatpush1.msra.mxu0 %v28
  %1471 = vmatprep.subr.mxu0 0.0
  %1472 = vmatpush1.msra.mxu0 %v27
  %1473 = vmatprep.subr.mxu0 0.0
  %1474 = vmatpush1.msra.mxu0 %v26
  %1475 = vmatprep.subr.mxu0 0.0
  %1476 = vmatpush2.msra.mxu0 0.0
  %1477 = vmatprep.subr.mxu0 0.0
  %1478 = vmatpush2.msra.mxu0 0.0
  %1479 = vmatprep.subr.mxu0 0.0
  %1480 = vmatpush2.msra.mxu0 0.0
  %1481 = vmatprep.subr.mxu0 0.0
  %1482 = vmatpush2.msra.mxu0 0.0
  %1483 = vmatprep.subr.mxu0 0.0
  %1484 = vmatpush2.msra.mxu0 0.0
  %1485 = vmatprep.subr.mxu0 0.0
  %1486 = vmatpush2.msra.mxu0 0.0
  %1487 = vmatprep.subr.mxu0 0.0
  %1488 = vmatpush2.msra.mxu0 0.0
  %1489 = vmatprep.subr.mxu0 0.0
  %1490 = vmatpush2.msra.mxu0 0.0
  %1491 = vmatprep.subr.mxu0 0.0
  %1492 = vmatpush2.msra.mxu0 0.0
  %1493 = vmatprep.subr.mxu0 0.0
  %1494 = vmatpush2.msra.mxu0 0.0
  %1495 = vmatprep.subr.mxu0 0.0
  %1496 = vmatpush2.msra.mxu0 0.0
  %1497 = vmatprep.subr.mxu0 0.0
  %1498 = vmatpush2.msra.mxu0 0.0
  %1499 = vmatprep.subr.mxu0 0.0
  %1500 = vmatpush2.msra.mxu0 0.0
  %1501 = vmatprep.subr.mxu0 0.0
  %1502 = vmatpush2.msra.mxu0 0.0
  %1503 = vmatprep.subr.mxu0 0.0
  %1504 = vmatpush2.msra.mxu0 0.0
  %1505 = vmatprep.subr.mxu0 0.0
  %1506 = vmatpush2.msra.mxu0 0.0
  %1507 = vmatprep.mubr.f32.mxu0 0.0
  %1508 = vmatmul.mubr.f32.gmra.mxu0 %v1441
  %v1509 = vpop.f32.mrf.mxu0
  %v1510 = vadd.f32 0.0, %v1509
  %v1511 = vpop.f32.mrf.mxu0
  %1512 = vdwg.mxu0
  %1513 = vmatprep.subr.mxu0 0.0
  %1514 = vmatpush1.msra.mxu0 0.0
  %1515 = vmatprep.subr.mxu0 0.0
  %1516 = vmatpush1.msra.mxu0 0.0
  %1517 = vmatprep.subr.mxu0 0.0
  %1518 = vmatpush1.msra.mxu0 0.0
  %1519 = vmatprep.subr.mxu0 0.0
  %1520 = vmatpush1.msra.mxu0 0.0
  %1521 = vmatprep.subr.mxu0 0.0
  %1522 = vmatpush1.msra.mxu0 0.0
  %1523 = vmatprep.subr.mxu0 0.0
  %1524 = vmatpush1.msra.mxu0 0.0
  %1525 = vmatprep.subr.mxu0 0.0
  %1526 = vmatpush1.msra.mxu0 0.0
  %1527 = vmatprep.subr.mxu0 0.0
  %1528 = vmatpush1.msra.mxu0 0.0
  %1529 = vmatprep.subr.mxu0 0.0
  %1530 = vmatpush1.msra.mxu0 0.0
  %1531 = vmatprep.subr.mxu0 0.0
  %1532 = vmatpush1.msra.mxu0 0.0
  %1533 = vmatprep.subr.mxu0 0.0
  %1534 = vmatpush1.msra.mxu0 0.0
  %1535 = vmatprep.subr.mxu0 0.0
  %1536 = vmatpush1.msra.mxu0 0.0
  %1537 = vmatprep.subr.mxu0 0.0
  %1538 = vmatpush1.msra.mxu0 %v33
  %1539 = vmatprep.subr.mxu0 0.0
  %1540 = vmatpush1.msra.mxu0 %v32
  %1541 = vmatprep.subr.mxu0 0.0
  %1542 = vmatpush1.msra.mxu0 %v31
  %1543 = vmatprep.subr.mxu0 0.0
  %1544 = vmatpush1.msra.mxu0 %v30
  %1545 = vmatprep.subr.mxu0 0.0
  %1546 = vmatpush2.msra.mxu0 0.0
  %1547 = vmatprep.subr.mxu0 0.0
  %1548 = vmatpush2.msra.mxu0 0.0
  %1549 = vmatprep.subr.mxu0 0.0
  %1550 = vmatpush2.msra.mxu0 0.0
  %1551 = vmatprep.subr.mxu0 0.0
  %1552 = vmatpush2.msra.mxu0 0.0
  %1553 = vmatprep.subr.mxu0 0.0
  %1554 = vmatpush2.msra.mxu0 0.0
  %1555 = vmatprep.subr.mxu0 0.0
  %1556 = vmatpush2.msra.mxu0 0.0
  %1557 = vmatprep.subr.mxu0 0.0
  %1558 = vmatpush2.msra.mxu0 0.0
  %1559 = vmatprep.subr.mxu0 0.0
  %1560 = vmatpush2.msra.mxu0 0.0
  %1561 = vmatprep.subr.mxu0 0.0
  %1562 = vmatpush2.msra.mxu0 0.0
  %1563 = vmatprep.subr.mxu0 0.0
  %1564 = vmatpush2.msra.mxu0 0.0
  %1565 = vmatprep.subr.mxu0 0.0
  %1566 = vmatpush2.msra.mxu0 0.0
  %1567 = vmatprep.subr.mxu0 0.0
  %1568 = vmatpush2.msra.mxu0 0.0
  %1569 = vmatprep.subr.mxu0 0.0
  %1570 = vmatpush2.msra.mxu0 0.0
  %1571 = vmatprep.subr.mxu0 0.0
  %1572 = vmatpush2.msra.mxu0 0.0
  %1573 = vmatprep.subr.mxu0 0.0
  %1574 = vmatpush2.msra.mxu0 0.0
  %1575 = vmatprep.subr.mxu0 0.0
  %1576 = vmatpush2.msra.mxu0 0.0
  %1577 = vmatprep.mubr.f32.mxu0 0.0
  %1578 = vmatmul.mubr.f32.gmra.mxu0 %v1441
  %v1579 = vpop.f32.mrf.mxu0
  %v1580 = vadd.f32 0.0, %v1579
  %v1581 = vpop.f32.mrf.mxu0
  %1582 = vdwg.mxu0
  %v1584 = vrot.slane %v1510, 4
  %v1586 = vadd.f32 %v144, %v1584
  %v1587 = vxor.u32 %v1586, 2147483648
  %v1588 = vmul.f32 %v1587, 1.442695
  %v1589 = vpow.pop %v1588
  %v1590 = vadd.f32 %v1589, 1.0
  %v1591 = vrcp.pop %v1590
  %v1592 = vmul.f32 1.0, %v1591
  %v1594 = vrot.slane %v1580, 4
  %1595 = vrot.lane.b32.xlu0 %v1594, 32
  %v1596 = vpop.permute.xlu0 %1595
  %v1598 = vadd.f32 %v144, %v1596
  %v1599 = vxor.u32 %v1598, 2147483648
  %v1600 = vmul.f32 %v1599, 1.442695
  %v1601 = vpow.pop %v1600
  %v1602 = vadd.f32 %v1601, 1.0
  %v1603 = vrcp.pop %v1602
  %v1604 = vmul.f32 1.0, %v1603
  %1605 = vmatprep.subr.mxu0 0.0
  %1606 = vmatpush1.msra.mxu0 0.0
  %1607 = vmatprep.subr.mxu0 0.0
  %1608 = vmatpush1.msra.mxu0 0.0
  %1609 = vmatprep.subr.mxu0 0.0
  %1610 = vmatpush1.msra.mxu0 0.0
  %1611 = vmatprep.subr.mxu0 0.0
  %1612 = vmatpush1.msra.mxu0 0.0
  %1613 = vmatprep.subr.mxu0 0.0
  %1614 = vmatpush1.msra.mxu0 0.0
  %1615 = vmatprep.subr.mxu0 0.0
  %1616 = vmatpush1.msra.mxu0 0.0
  %1617 = vmatprep.subr.mxu0 0.0
  %1618 = vmatpush1.msra.mxu0 0.0
  %1619 = vmatprep.subr.mxu0 0.0
  %1620 = vmatpush1.msra.mxu0 0.0
  %1621 = vmatprep.subr.mxu0 0.0
  %1622 = vmatpush1.msra.mxu0 0.0
  %1623 = vmatprep.subr.mxu0 0.0
  %1624 = vmatpush1.msra.mxu0 0.0
  %1625 = vmatprep.subr.mxu0 0.0
  %1626 = vmatpush1.msra.mxu0 0.0
  %1627 = vmatprep.subr.mxu0 0.0
  %1628 = vmatpush1.msra.mxu0 0.0
  %1629 = vmatprep.subr.mxu0 0.0
  %1630 = vmatpush1.msra.mxu0 %v37
  %1631 = vmatprep.subr.mxu0 0.0
  %1632 = vmatpush1.msra.mxu0 %v36
  %1633 = vmatprep.subr.mxu0 0.0
  %1634 = vmatpush1.msra.mxu0 %v35
  %1635 = vmatprep.subr.mxu0 0.0
  %1636 = vmatpush1.msra.mxu0 %v34
  %1637 = vmatprep.subr.mxu0 0.0
  %1638 = vmatpush2.msra.mxu0 0.0
  %1639 = vmatprep.subr.mxu0 0.0
  %1640 = vmatpush2.msra.mxu0 0.0
  %1641 = vmatprep.subr.mxu0 0.0
  %1642 = vmatpush2.msra.mxu0 0.0
  %1643 = vmatprep.subr.mxu0 0.0
  %1644 = vmatpush2.msra.mxu0 0.0
  %1645 = vmatprep.subr.mxu0 0.0
  %1646 = vmatpush2.msra.mxu0 0.0
  %1647 = vmatprep.subr.mxu0 0.0
  %1648 = vmatpush2.msra.mxu0 0.0
  %1649 = vmatprep.subr.mxu0 0.0
  %1650 = vmatpush2.msra.mxu0 0.0
  %1651 = vmatprep.subr.mxu0 0.0
  %1652 = vmatpush2.msra.mxu0 0.0
  %1653 = vmatprep.subr.mxu0 0.0
  %1654 = vmatpush2.msra.mxu0 0.0
  %1655 = vmatprep.subr.mxu0 0.0
  %1656 = vmatpush2.msra.mxu0 0.0
  %1657 = vmatprep.subr.mxu0 0.0
  %1658 = vmatpush2.msra.mxu0 0.0
  %1659 = vmatprep.subr.mxu0 0.0
  %1660 = vmatpush2.msra.mxu0 0.0
  %1661 = vmatprep.subr.mxu0 0.0
  %1662 = vmatpush2.msra.mxu0 0.0
  %1663 = vmatprep.subr.mxu0 0.0
  %1664 = vmatpush2.msra.mxu0 0.0
  %1665 = vmatprep.subr.mxu0 0.0
  %1666 = vmatpush2.msra.mxu0 0.0
  %1667 = vmatprep.subr.mxu0 0.0
  %1668 = vmatpush2.msra.mxu0 0.0
  %1669 = vmatprep.mubr.f32.mxu0 0.0
  %1670 = vmatmul.mubr.f32.gmra.mxu0 %v1441
  %v1671 = vpop.f32.mrf.mxu0
  %v1672 = vadd.f32 %v317, %v1671
  %v1673 = vpop.f32.mrf.mxu0
  %1674 = vdwg.mxu0
  %v1676 = vrot.slane %v1672, 4
  %v1678 = vmul.f32 %v1592, %v1676
  %1680 = vrot.lane.b32.xlu0 %v1678, 64
  %v1681 = vpop.permute.xlu0 %1680
  %v1683 = vadd.f32 %v144, %v1681
  %v1684 = vtanh.pop %v1683
  %v1685 = vsub.f32 1.0, %v1604
  %1687 = vrot.lane.b32.xlu0 %v1684, 96
  %v1688 = vpop.permute.xlu0 %1687
  %v1690 = vmul.f32 %v1685, %v1688
  %v1691 = vrot.slane %v1434, 4
  %v1693 = vmul.f32 %v1604, %v1691
  %v1694 = vadd.f32 %v1690, %v1693
  %1696 = vrot.lane.b32.xlu0 %v1694, 96
  %v1697 = vpop.permute.xlu0 %1696
  %s1699 = scalar_lea.vmem %s7, 20
  %1700 = vst.msk [vmem:[%s1699 - $0x4] sm:$0xf0] %vm669, %v1697
  %v1701 = vrot.slane %v1694, 4
  %1702 = vrot.lane.b32.xlu0 %v1701, 96
  %v1703 = vpop.permute.xlu0 %1702
  %v1704 = vsel %vm54, %v1703, 0
  %1706 = vmatprep.subr.mxu0 0.0
  %1707 = vmatpush1.msra.mxu0 0.0
  %1708 = vmatprep.subr.mxu0 0.0
  %1709 = vmatpush1.msra.mxu0 0.0
  %1710 = vmatprep.subr.mxu0 0.0
  %1711 = vmatpush1.msra.mxu0 0.0
  %1712 = vmatprep.subr.mxu0 0.0
  %1713 = vmatpush1.msra.mxu0 0.0
  %1714 = vmatprep.subr.mxu0 0.0
  %1715 = vmatpush1.msra.mxu0 0.0
  %1716 = vmatprep.subr.mxu0 0.0
  %1717 = vmatpush1.msra.mxu0 0.0
  %1718 = vmatprep.subr.mxu0 0.0
  %1719 = vmatpush1.msra.mxu0 0.0
  %1720 = vmatprep.subr.mxu0 0.0
  %1721 = vmatpush1.msra.mxu0 0.0
  %1722 = vmatprep.subr.mxu0 0.0
  %1723 = vmatpush1.msra.mxu0 0.0
  %1724 = vmatprep.subr.mxu0 0.0
  %1725 = vmatpush1.msra.mxu0 0.0
  %1726 = vmatprep.subr.mxu0 0.0
  %1727 = vmatpush1.msra.mxu0 0.0
  %1728 = vmatprep.subr.mxu0 0.0
  %1729 = vmatpush1.msra.mxu0 0.0
  %1730 = vmatprep.subr.mxu0 0.0
  %1731 = vmatpush1.msra.mxu0 %v29
  %1732 = vmatprep.subr.mxu0 0.0
  %1733 = vmatpush1.msra.mxu0 %v28
  %1734 = vmatprep.subr.mxu0 0.0
  %1735 = vmatpush1.msra.mxu0 %v27
  %1736 = vmatprep.subr.mxu0 0.0
  %1737 = vmatpush1.msra.mxu0 %v26
  %1738 = vmatprep.subr.mxu0 0.0
  %1739 = vmatpush2.msra.mxu0 0.0
  %1740 = vmatprep.subr.mxu0 0.0
  %1741 = vmatpush2.msra.mxu0 0.0
  %1742 = vmatprep.subr.mxu0 0.0
  %1743 = vmatpush2.msra.mxu0 0.0
  %1744 = vmatprep.subr.mxu0 0.0
  %1745 = vmatpush2.msra.mxu0 0.0
  %1746 = vmatprep.subr.mxu0 0.0
  %1747 = vmatpush2.msra.mxu0 0.0
  %1748 = vmatprep.subr.mxu0 0.0
  %1749 = vmatpush2.msra.mxu0 0.0
  %1750 = vmatprep.subr.mxu0 0.0
  %1751 = vmatpush2.msra.mxu0 0.0
  %1752 = vmatprep.subr.mxu0 0.0
  %1753 = vmatpush2.msra.mxu0 0.0
  %1754 = vmatprep.subr.mxu0 0.0
  %1755 = vmatpush2.msra.mxu0 0.0
  %1756 = vmatprep.subr.mxu0 0.0
  %1757 = vmatpush2.msra.mxu0 0.0
  %1758 = vmatprep.subr.mxu0 0.0
  %1759 = vmatpush2.msra.mxu0 0.0
  %1760 = vmatprep.subr.mxu0 0.0
  %1761 = vmatpush2.msra.mxu0 0.0
  %1762 = vmatprep.subr.mxu0 0.0
  %1763 = vmatpush2.msra.mxu0 0.0
  %1764 = vmatprep.subr.mxu0 0.0
  %1765 = vmatpush2.msra.mxu0 0.0
  %1766 = vmatprep.subr.mxu0 0.0
  %1767 = vmatpush2.msra.mxu0 0.0
  %1768 = vmatprep.subr.mxu0 0.0
  %1769 = vmatpush2.msra.mxu0 0.0
  %1770 = vmatprep.mubr.f32.mxu0 0.0
  %1771 = vmatmul.mubr.f32.gmra.mxu0 %v1704
  %v1772 = vpop.f32.mrf.mxu0
  %v1773 = vadd.f32 0.0, %v1772
  %v1774 = vpop.f32.mrf.mxu0
  %1775 = vdwg.mxu0
  %1776 = vmatprep.subr.mxu0 0.0
  %1777 = vmatpush1.msra.mxu0 0.0
  %1778 = vmatprep.subr.mxu0 0.0
  %1779 = vmatpush1.msra.mxu0 0.0
  %1780 = vmatprep.subr.mxu0 0.0
  %1781 = vmatpush1.msra.mxu0 0.0
  %1782 = vmatprep.subr.mxu0 0.0
  %1783 = vmatpush1.msra.mxu0 0.0
  %1784 = vmatprep.subr.mxu0 0.0
  %1785 = vmatpush1.msra.mxu0 0.0
  %1786 = vmatprep.subr.mxu0 0.0
  %1787 = vmatpush1.msra.mxu0 0.0
  %1788 = vmatprep.subr.mxu0 0.0
  %1789 = vmatpush1.msra.mxu0 0.0
  %1790 = vmatprep.subr.mxu0 0.0
  %1791 = vmatpush1.msra.mxu0 0.0
  %1792 = vmatprep.subr.mxu0 0.0
  %1793 = vmatpush1.msra.mxu0 0.0
  %1794 = vmatprep.subr.mxu0 0.0
  %1795 = vmatpush1.msra.mxu0 0.0
  %1796 = vmatprep.subr.mxu0 0.0
  %1797 = vmatpush1.msra.mxu0 0.0
  %1798 = vmatprep.subr.mxu0 0.0
  %1799 = vmatpush1.msra.mxu0 0.0
  %1800 = vmatprep.subr.mxu0 0.0
  %1801 = vmatpush1.msra.mxu0 %v33
  %1802 = vmatprep.subr.mxu0 0.0
  %1803 = vmatpush1.msra.mxu0 %v32
  %1804 = vmatprep.subr.mxu0 0.0
  %1805 = vmatpush1.msra.mxu0 %v31
  %1806 = vmatprep.subr.mxu0 0.0
  %1807 = vmatpush1.msra.mxu0 %v30
  %1808 = vmatprep.subr.mxu0 0.0
  %1809 = vmatpush2.msra.mxu0 0.0
  %1810 = vmatprep.subr.mxu0 0.0
  %1811 = vmatpush2.msra.mxu0 0.0
  %1812 = vmatprep.subr.mxu0 0.0
  %1813 = vmatpush2.msra.mxu0 0.0
  %1814 = vmatprep.subr.mxu0 0.0
  %1815 = vmatpush2.msra.mxu0 0.0
  %1816 = vmatprep.subr.mxu0 0.0
  %1817 = vmatpush2.msra.mxu0 0.0
  %1818 = vmatprep.subr.mxu0 0.0
  %1819 = vmatpush2.msra.mxu0 0.0
  %1820 = vmatprep.subr.mxu0 0.0
  %1821 = vmatpush2.msra.mxu0 0.0
  %1822 = vmatprep.subr.mxu0 0.0
  %1823 = vmatpush2.msra.mxu0 0.0
  %1824 = vmatprep.subr.mxu0 0.0
  %1825 = vmatpush2.msra.mxu0 0.0
  %1826 = vmatprep.subr.mxu0 0.0
  %1827 = vmatpush2.msra.mxu0 0.0
  %1828 = vmatprep.subr.mxu0 0.0
  %1829 = vmatpush2.msra.mxu0 0.0
  %1830 = vmatprep.subr.mxu0 0.0
  %1831 = vmatpush2.msra.mxu0 0.0
  %1832 = vmatprep.subr.mxu0 0.0
  %1833 = vmatpush2.msra.mxu0 0.0
  %1834 = vmatprep.subr.mxu0 0.0
  %1835 = vmatpush2.msra.mxu0 0.0
  %1836 = vmatprep.subr.mxu0 0.0
  %1837 = vmatpush2.msra.mxu0 0.0
  %1838 = vmatprep.subr.mxu0 0.0
  %1839 = vmatpush2.msra.mxu0 0.0
  %1840 = vmatprep.mubr.f32.mxu0 0.0
  %1841 = vmatmul.mubr.f32.gmra.mxu0 %v1704
  %v1842 = vpop.f32.mrf.mxu0
  %v1843 = vadd.f32 0.0, %v1842
  %v1844 = vpop.f32.mrf.mxu0
  %1845 = vdwg.mxu0
  %v1846 = vadd.f32 %v149, %v1773
  %v1847 = vxor.u32 %v1846, 2147483648
  %v1848 = vmul.f32 %v1847, 1.442695
  %v1849 = vpow.pop %v1848
  %v1850 = vadd.f32 %v1849, 1.0
  %v1851 = vrcp.pop %v1850
  %v1852 = vmul.f32 1.0, %v1851
  %1854 = vrot.lane.b32.xlu0 %v1843, 32
  %v1855 = vpop.permute.xlu0 %1854
  %v1857 = vadd.f32 %v149, %v1855
  %v1858 = vxor.u32 %v1857, 2147483648
  %v1859 = vmul.f32 %v1858, 1.442695
  %v1860 = vpow.pop %v1859
  %v1861 = vadd.f32 %v1860, 1.0
  %v1862 = vrcp.pop %v1861
  %v1863 = vmul.f32 1.0, %v1862
  %1864 = vmatprep.subr.mxu0 0.0
  %1865 = vmatpush1.msra.mxu0 0.0
  %1866 = vmatprep.subr.mxu0 0.0
  %1867 = vmatpush1.msra.mxu0 0.0
  %1868 = vmatprep.subr.mxu0 0.0
  %1869 = vmatpush1.msra.mxu0 0.0
  %1870 = vmatprep.subr.mxu0 0.0
  %1871 = vmatpush1.msra.mxu0 0.0
  %1872 = vmatprep.subr.mxu0 0.0
  %1873 = vmatpush1.msra.mxu0 0.0
  %1874 = vmatprep.subr.mxu0 0.0
  %1875 = vmatpush1.msra.mxu0 0.0
  %1876 = vmatprep.subr.mxu0 0.0
  %1877 = vmatpush1.msra.mxu0 0.0
  %1878 = vmatprep.subr.mxu0 0.0
  %1879 = vmatpush1.msra.mxu0 0.0
  %1880 = vmatprep.subr.mxu0 0.0
  %1881 = vmatpush1.msra.mxu0 0.0
  %1882 = vmatprep.subr.mxu0 0.0
  %1883 = vmatpush1.msra.mxu0 0.0
  %1884 = vmatprep.subr.mxu0 0.0
  %1885 = vmatpush1.msra.mxu0 0.0
  %1886 = vmatprep.subr.mxu0 0.0
  %1887 = vmatpush1.msra.mxu0 0.0
  %1888 = vmatprep.subr.mxu0 0.0
  %1889 = vmatpush1.msra.mxu0 %v37
  %1890 = vmatprep.subr.mxu0 0.0
  %1891 = vmatpush1.msra.mxu0 %v36
  %1892 = vmatprep.subr.mxu0 0.0
  %1893 = vmatpush1.msra.mxu0 %v35
  %1894 = vmatprep.subr.mxu0 0.0
  %1895 = vmatpush1.msra.mxu0 %v34
  %1896 = vmatprep.subr.mxu0 0.0
  %1897 = vmatpush2.msra.mxu0 0.0
  %1898 = vmatprep.subr.mxu0 0.0
  %1899 = vmatpush2.msra.mxu0 0.0
  %1900 = vmatprep.subr.mxu0 0.0
  %1901 = vmatpush2.msra.mxu0 0.0
  %1902 = vmatprep.subr.mxu0 0.0
  %1903 = vmatpush2.msra.mxu0 0.0
  %1904 = vmatprep.subr.mxu0 0.0
  %1905 = vmatpush2.msra.mxu0 0.0
  %1906 = vmatprep.subr.mxu0 0.0
  %1907 = vmatpush2.msra.mxu0 0.0
  %1908 = vmatprep.subr.mxu0 0.0
  %1909 = vmatpush2.msra.mxu0 0.0
  %1910 = vmatprep.subr.mxu0 0.0
  %1911 = vmatpush2.msra.mxu0 0.0
  %1912 = vmatprep.subr.mxu0 0.0
  %1913 = vmatpush2.msra.mxu0 0.0
  %1914 = vmatprep.subr.mxu0 0.0
  %1915 = vmatpush2.msra.mxu0 0.0
  %1916 = vmatprep.subr.mxu0 0.0
  %1917 = vmatpush2.msra.mxu0 0.0
  %1918 = vmatprep.subr.mxu0 0.0
  %1919 = vmatpush2.msra.mxu0 0.0
  %1920 = vmatprep.subr.mxu0 0.0
  %1921 = vmatpush2.msra.mxu0 0.0
  %1922 = vmatprep.subr.mxu0 0.0
  %1923 = vmatpush2.msra.mxu0 0.0
  %1924 = vmatprep.subr.mxu0 0.0
  %1925 = vmatpush2.msra.mxu0 0.0
  %1926 = vmatprep.subr.mxu0 0.0
  %1927 = vmatpush2.msra.mxu0 0.0
  %1928 = vmatprep.mubr.f32.mxu0 0.0
  %1929 = vmatmul.mubr.f32.gmra.mxu0 %v1704
  %v1930 = vpop.f32.mrf.mxu0
  %v1931 = vadd.f32 %v317, %v1930
  %v1932 = vpop.f32.mrf.mxu0
  %1933 = vdwg.mxu0
  %v1934 = vmul.f32 %v1852, %v1931
  %1936 = vrot.lane.b32.xlu0 %v1934, 64
  %v1937 = vpop.permute.xlu0 %1936
  %v1939 = vadd.f32 %v149, %v1937
  %v1940 = vtanh.pop %v1939
  %v1941 = vsub.f32 1.0, %v1863
  %1943 = vrot.lane.b32.xlu0 %v1940, 96
  %v1944 = vpop.permute.xlu0 %1943
  %v1946 = vmul.f32 %v1941, %v1944
  %v1948 = vmul.f32 %v1863, %v1701
  %v1949 = vadd.f32 %v1946, %v1948
  %1951 = vrot.lane.b32.xlu0 %v1949, 96
  %v1952 = vpop.permute.xlu0 %1951
  %s1954 = scalar_lea.vmem %s7, 24
  %1955 = vst.msk [vmem:[%s1954] sm:$0xf] %vm408, %v1952
  %v1956 = vsel %vm54, %v1952, 0
  %1958 = vmatprep.subr.mxu0 0.0
  %1959 = vmatpush1.msra.mxu0 0.0
  %1960 = vmatprep.subr.mxu0 0.0
  %1961 = vmatpush1.msra.mxu0 0.0
  %1962 = vmatprep.subr.mxu0 0.0
  %1963 = vmatpush1.msra.mxu0 0.0
  %1964 = vmatprep.subr.mxu0 0.0
  %1965 = vmatpush1.msra.mxu0 0.0
  %1966 = vmatprep.subr.mxu0 0.0
  %1967 = vmatpush1.msra.mxu0 0.0
  %1968 = vmatprep.subr.mxu0 0.0
  %1969 = vmatpush1.msra.mxu0 0.0
  %1970 = vmatprep.subr.mxu0 0.0
  %1971 = vmatpush1.msra.mxu0 0.0
  %1972 = vmatprep.subr.mxu0 0.0
  %1973 = vmatpush1.msra.mxu0 0.0
  %1974 = vmatprep.subr.mxu0 0.0
  %1975 = vmatpush1.msra.mxu0 0.0
  %1976 = vmatprep.subr.mxu0 0.0
  %1977 = vmatpush1.msra.mxu0 0.0
  %1978 = vmatprep.subr.mxu0 0.0
  %1979 = vmatpush1.msra.mxu0 0.0
  %1980 = vmatprep.subr.mxu0 0.0
  %1981 = vmatpush1.msra.mxu0 0.0
  %1982 = vmatprep.subr.mxu0 0.0
  %1983 = vmatpush1.msra.mxu0 %v29
  %1984 = vmatprep.subr.mxu0 0.0
  %1985 = vmatpush1.msra.mxu0 %v28
  %1986 = vmatprep.subr.mxu0 0.0
  %1987 = vmatpush1.msra.mxu0 %v27
  %1988 = vmatprep.subr.mxu0 0.0
  %1989 = vmatpush1.msra.mxu0 %v26
  %1990 = vmatprep.subr.mxu0 0.0
  %1991 = vmatpush2.msra.mxu0 0.0
  %1992 = vmatprep.subr.mxu0 0.0
  %1993 = vmatpush2.msra.mxu0 0.0
  %1994 = vmatprep.subr.mxu0 0.0
  %1995 = vmatpush2.msra.mxu0 0.0
  %1996 = vmatprep.subr.mxu0 0.0
  %1997 = vmatpush2.msra.mxu0 0.0
  %1998 = vmatprep.subr.mxu0 0.0
  %1999 = vmatpush2.msra.mxu0 0.0
  %2000 = vmatprep.subr.mxu0 0.0
  %2001 = vmatpush2.msra.mxu0 0.0
  %2002 = vmatprep.subr.mxu0 0.0
  %2003 = vmatpush2.msra.mxu0 0.0
  %2004 = vmatprep.subr.mxu0 0.0
  %2005 = vmatpush2.msra.mxu0 0.0
  %2006 = vmatprep.subr.mxu0 0.0
  %2007 = vmatpush2.msra.mxu0 0.0
  %2008 = vmatprep.subr.mxu0 0.0
  %2009 = vmatpush2.msra.mxu0 0.0
  %2010 = vmatprep.subr.mxu0 0.0
  %2011 = vmatpush2.msra.mxu0 0.0
  %2012 = vmatprep.subr.mxu0 0.0
  %2013 = vmatpush2.msra.mxu0 0.0
  %2014 = vmatprep.subr.mxu0 0.0
  %2015 = vmatpush2.msra.mxu0 0.0
  %2016 = vmatprep.subr.mxu0 0.0
  %2017 = vmatpush2.msra.mxu0 0.0
  %2018 = vmatprep.subr.mxu0 0.0
  %2019 = vmatpush2.msra.mxu0 0.0
  %2020 = vmatprep.subr.mxu0 0.0
  %2021 = vmatpush2.msra.mxu0 0.0
  %2022 = vmatprep.mubr.f32.mxu0 0.0
  %2023 = vmatmul.mubr.f32.gmra.mxu0 %v1956
  %v2024 = vpop.f32.mrf.mxu0
  %v2025 = vadd.f32 0.0, %v2024
  %v2026 = vpop.f32.mrf.mxu0
  %2027 = vdwg.mxu0
  %2028 = vmatprep.subr.mxu0 0.0
  %2029 = vmatpush1.msra.mxu0 0.0
  %2030 = vmatprep.subr.mxu0 0.0
  %2031 = vmatpush1.msra.mxu0 0.0
  %2032 = vmatprep.subr.mxu0 0.0
  %2033 = vmatpush1.msra.mxu0 0.0
  %2034 = vmatprep.subr.mxu0 0.0
  %2035 = vmatpush1.msra.mxu0 0.0
  %2036 = vmatprep.subr.mxu0 0.0
  %2037 = vmatpush1.msra.mxu0 0.0
  %2038 = vmatprep.subr.mxu0 0.0
  %2039 = vmatpush1.msra.mxu0 0.0
  %2040 = vmatprep.subr.mxu0 0.0
  %2041 = vmatpush1.msra.mxu0 0.0
  %2042 = vmatprep.subr.mxu0 0.0
  %2043 = vmatpush1.msra.mxu0 0.0
  %2044 = vmatprep.subr.mxu0 0.0
  %2045 = vmatpush1.msra.mxu0 0.0
  %2046 = vmatprep.subr.mxu0 0.0
  %2047 = vmatpush1.msra.mxu0 0.0
  %2048 = vmatprep.subr.mxu0 0.0
  %2049 = vmatpush1.msra.mxu0 0.0
  %2050 = vmatprep.subr.mxu0 0.0
  %2051 = vmatpush1.msra.mxu0 0.0
  %2052 = vmatprep.subr.mxu0 0.0
  %2053 = vmatpush1.msra.mxu0 %v33
  %2054 = vmatprep.subr.mxu0 0.0
  %2055 = vmatpush1.msra.mxu0 %v32
  %2056 = vmatprep.subr.mxu0 0.0
  %2057 = vmatpush1.msra.mxu0 %v31
  %2058 = vmatprep.subr.mxu0 0.0
  %2059 = vmatpush1.msra.mxu0 %v30
  %2060 = vmatprep.subr.mxu0 0.0
  %2061 = vmatpush2.msra.mxu0 0.0
  %2062 = vmatprep.subr.mxu0 0.0
  %2063 = vmatpush2.msra.mxu0 0.0
  %2064 = vmatprep.subr.mxu0 0.0
  %2065 = vmatpush2.msra.mxu0 0.0
  %2066 = vmatprep.subr.mxu0 0.0
  %2067 = vmatpush2.msra.mxu0 0.0
  %2068 = vmatprep.subr.mxu0 0.0
  %2069 = vmatpush2.msra.mxu0 0.0
  %2070 = vmatprep.subr.mxu0 0.0
  %2071 = vmatpush2.msra.mxu0 0.0
  %2072 = vmatprep.subr.mxu0 0.0
  %2073 = vmatpush2.msra.mxu0 0.0
  %2074 = vmatprep.subr.mxu0 0.0
  %2075 = vmatpush2.msra.mxu0 0.0
  %2076 = vmatprep.subr.mxu0 0.0
  %2077 = vmatpush2.msra.mxu0 0.0
  %2078 = vmatprep.subr.mxu0 0.0
  %2079 = vmatpush2.msra.mxu0 0.0
  %2080 = vmatprep.subr.mxu0 0.0
  %2081 = vmatpush2.msra.mxu0 0.0
  %2082 = vmatprep.subr.mxu0 0.0
  %2083 = vmatpush2.msra.mxu0 0.0
  %2084 = vmatprep.subr.mxu0 0.0
  %2085 = vmatpush2.msra.mxu0 0.0
  %2086 = vmatprep.subr.mxu0 0.0
  %2087 = vmatpush2.msra.mxu0 0.0
  %2088 = vmatprep.subr.mxu0 0.0
  %2089 = vmatpush2.msra.mxu0 0.0
  %2090 = vmatprep.subr.mxu0 0.0
  %2091 = vmatpush2.msra.mxu0 0.0
  %2092 = vmatprep.mubr.f32.mxu0 0.0
  %2093 = vmatmul.mubr.f32.gmra.mxu0 %v1956
  %v2094 = vpop.f32.mrf.mxu0
  %v2095 = vadd.f32 0.0, %v2094
  %v2096 = vpop.f32.mrf.mxu0
  %2097 = vdwg.mxu0
  %v2099 = vrot.slane %v2025, 4
  %v2101 = vadd.f32 %v149, %v2099
  %v2102 = vxor.u32 %v2101, 2147483648
  %v2103 = vmul.f32 %v2102, 1.442695
  %v2104 = vpow.pop %v2103
  %v2105 = vadd.f32 %v2104, 1.0
  %v2106 = vrcp.pop %v2105
  %v2107 = vmul.f32 1.0, %v2106
  %v2109 = vrot.slane %v2095, 4
  %2110 = vrot.lane.b32.xlu0 %v2109, 32
  %v2111 = vpop.permute.xlu0 %2110
  %v2113 = vadd.f32 %v149, %v2111
  %v2114 = vxor.u32 %v2113, 2147483648
  %v2115 = vmul.f32 %v2114, 1.442695
  %v2116 = vpow.pop %v2115
  %v2117 = vadd.f32 %v2116, 1.0
  %v2118 = vrcp.pop %v2117
  %v2119 = vmul.f32 1.0, %v2118
  %2120 = vmatprep.subr.mxu0 0.0
  %2121 = vmatpush1.msra.mxu0 0.0
  %2122 = vmatprep.subr.mxu0 0.0
  %2123 = vmatpush1.msra.mxu0 0.0
  %2124 = vmatprep.subr.mxu0 0.0
  %2125 = vmatpush1.msra.mxu0 0.0
  %2126 = vmatprep.subr.mxu0 0.0
  %2127 = vmatpush1.msra.mxu0 0.0
  %2128 = vmatprep.subr.mxu0 0.0
  %2129 = vmatpush1.msra.mxu0 0.0
  %2130 = vmatprep.subr.mxu0 0.0
  %2131 = vmatpush1.msra.mxu0 0.0
  %2132 = vmatprep.subr.mxu0 0.0
  %2133 = vmatpush1.msra.mxu0 0.0
  %2134 = vmatprep.subr.mxu0 0.0
  %2135 = vmatpush1.msra.mxu0 0.0
  %2136 = vmatprep.subr.mxu0 0.0
  %2137 = vmatpush1.msra.mxu0 0.0
  %2138 = vmatprep.subr.mxu0 0.0
  %2139 = vmatpush1.msra.mxu0 0.0
  %2140 = vmatprep.subr.mxu0 0.0
  %2141 = vmatpush1.msra.mxu0 0.0
  %2142 = vmatprep.subr.mxu0 0.0
  %2143 = vmatpush1.msra.mxu0 0.0
  %2144 = vmatprep.subr.mxu0 0.0
  %2145 = vmatpush1.msra.mxu0 %v37
  %2146 = vmatprep.subr.mxu0 0.0
  %2147 = vmatpush1.msra.mxu0 %v36
  %2148 = vmatprep.subr.mxu0 0.0
  %2149 = vmatpush1.msra.mxu0 %v35
  %2150 = vmatprep.subr.mxu0 0.0
  %2151 = vmatpush1.msra.mxu0 %v34
  %2152 = vmatprep.subr.mxu0 0.0
  %2153 = vmatpush2.msra.mxu0 0.0
  %2154 = vmatprep.subr.mxu0 0.0
  %2155 = vmatpush2.msra.mxu0 0.0
  %2156 = vmatprep.subr.mxu0 0.0
  %2157 = vmatpush2.msra.mxu0 0.0
  %2158 = vmatprep.subr.mxu0 0.0
  %2159 = vmatpush2.msra.mxu0 0.0
  %2160 = vmatprep.subr.mxu0 0.0
  %2161 = vmatpush2.msra.mxu0 0.0
  %2162 = vmatprep.subr.mxu0 0.0
  %2163 = vmatpush2.msra.mxu0 0.0
  %2164 = vmatprep.subr.mxu0 0.0
  %2165 = vmatpush2.msra.mxu0 0.0
  %2166 = vmatprep.subr.mxu0 0.0
  %2167 = vmatpush2.msra.mxu0 0.0
  %2168 = vmatprep.subr.mxu0 0.0
  %2169 = vmatpush2.msra.mxu0 0.0
  %2170 = vmatprep.subr.mxu0 0.0
  %2171 = vmatpush2.msra.mxu0 0.0
  %2172 = vmatprep.subr.mxu0 0.0
  %2173 = vmatpush2.msra.mxu0 0.0
  %2174 = vmatprep.subr.mxu0 0.0
  %2175 = vmatpush2.msra.mxu0 0.0
  %2176 = vmatprep.subr.mxu0 0.0
  %2177 = vmatpush2.msra.mxu0 0.0
  %2178 = vmatprep.subr.mxu0 0.0
  %2179 = vmatpush2.msra.mxu0 0.0
  %2180 = vmatprep.subr.mxu0 0.0
  %2181 = vmatpush2.msra.mxu0 0.0
  %2182 = vmatprep.subr.mxu0 0.0
  %2183 = vmatpush2.msra.mxu0 0.0
  %2184 = vmatprep.mubr.f32.mxu0 0.0
  %2185 = vmatmul.mubr.f32.gmra.mxu0 %v1956
  %v2186 = vpop.f32.mrf.mxu0
  %v2187 = vadd.f32 %v317, %v2186
  %v2188 = vpop.f32.mrf.mxu0
  %2189 = vdwg.mxu0
  %v2191 = vrot.slane %v2187, 4
  %v2193 = vmul.f32 %v2107, %v2191
  %2195 = vrot.lane.b32.xlu0 %v2193, 64
  %v2196 = vpop.permute.xlu0 %2195
  %v2198 = vadd.f32 %v149, %v2196
  %v2199 = vtanh.pop %v2198
  %v2200 = vsub.f32 1.0, %v2119
  %2202 = vrot.lane.b32.xlu0 %v2199, 96
  %v2203 = vpop.permute.xlu0 %2202
  %v2205 = vmul.f32 %v2200, %v2203
  %v2206 = vrot.slane %v1949, 4
  %v2208 = vmul.f32 %v2119, %v2206
  %v2209 = vadd.f32 %v2205, %v2208
  %2211 = vrot.lane.b32.xlu0 %v2209, 96
  %v2212 = vpop.permute.xlu0 %2211
  %s2214 = scalar_lea.vmem %s7, 28
  %2215 = vst.msk [vmem:[%s2214 - $0x4] sm:$0xf0] %vm669, %v2212
  // Predicated region
  $region30: #{gru_rnn_module_s.1} parent=0 // pred_check
    _
  $region31: #{gru_rnn_module_s.1} parent=0 // pred_check_branch
    %2217 = sbr.rel (0) target = $region33
  $region32: #{gru_rnn_module_s.1} parent=0 // pred_region
    _
  $region33: #{gru_rnn_module_s.1} parent=0 // pred_fallthru
    _
  // Predicated region
  $region34: #{gru_rnn_module_s.1} parent=0 // pred_check
    _
  $region35: #{gru_rnn_module_s.1} parent=0 // pred_check_branch
    %2219 = sbr.rel (0) target = $region37
  $region36: #{gru_rnn_module_s.1} parent=0 // pred_region
    _
  $region37: #{gru_rnn_module_s.1} parent=0 // pred_fallthru
    _

</llo_original>
